<compile_context>
chip_gen: v5e
topology: v5e:2x2
jax: 0.10.0
libtpu: 0.0.40
codegen_flags: <defaults>
</compile_context>

<pallas_src>
import functools

import jax
import jax.numpy as jnp
import numpy as np
from jax import lax
from jax.experimental import pallas as pl
from jax.experimental.pallas import tpu as pltpu

NEG_SLOPE = 0.01   # nn.LeakyReLU default negative_slope
BN_EPS = 1e-5      # nn.BatchNorm2d default eps


def _leaky_relu(z):
    return jnp.where(z >= 0, z, NEG_SLOPE * z)


# -----------------------------------------------------------------------------
# Kernel: [optional fused BN+LeakyReLU prologue on the input]
#         -> 3x3 same conv (no bias) -> per-image channel sum / sum-of-squares.
# One grid step = one image.  x block: (1, Cin, H*W); y block: (1, Cout, H*W).
# -----------------------------------------------------------------------------
def _conv_bn_stats_kernel(x_ref, w_ref, scale_ref, bias_ref,
                          y_ref, sum_ref, sq_ref, xpad_ref,
                          *, H, W, apply_input_act):
    HW = H * W
    cout = y_ref.shape[1]

    x = x_ref[0]                                        # (Cin, H*W) f32
    if apply_input_act:                                 # fused BN+LReLU of prev layer
        x = _leaky_relu(x * scale_ref[...] + bias_ref[...])

    # Zero-padded copy of the flattened image in VMEM.  Reading at lane offset
    # lpad + s (s = (dy-1)*W + (dx-1), |s| <= W+1) yields the shifted pixels,
    # with zeros outside the image (handles the top/bottom halo).  lpad is a
    # multiple of 128, so the interior store below is a full, unmasked store.
    lpad = (xpad_ref.shape[1] - HW) // 2
    xpad_ref[...] = jnp.zeros_like(xpad_ref)
    xpad_ref[:, lpad:lpad + HW] = x

    # Column (w) coordinate of every flattened position, to mask taps that
    # would wrap across the left/right image border.
    iota = lax.broadcasted_iota(jnp.int32, (1, HW), 1)
    if (W & (W - 1)) == 0:
        col = iota & (W - 1)
    else:
        col = iota % W

    acc = jnp.zeros((cout, HW), jnp.float32)
    for dy in range(3):
        for dx in range(3):
            s = (dy - 1) * W + (dx - 1)
            patch = xpad_ref[:, lpad + s:lpad + s + HW]        # (Cin, H*W)
            if dx == 0:
                patch = jnp.where(col >= 1, patch, 0.0)
            elif dx == 2:
                patch = jnp.where(col <= W - 2, patch, 0.0)
            acc = acc + jnp.dot(w_ref[dy, dx], patch,
                                preferred_element_type=jnp.float32)

    y_ref[0] = acc                                             # lane-dense store
    sum_ref[0] = jnp.sum(acc, axis=1, keepdims=True)           # (Cout, 1)
    sq_ref[0] = jnp.sum(acc * acc, axis=1, keepdims=True)      # (Cout, 1)


def conv_bn_stats(x, w, scale, bias, *, H, W, apply_input_act):
    """x: (N, Cin, H*W) f32; w: (3, 3, Cout, Cin) f32; scale/bias: (Cin, 1) f32."""
    N, Cin, HW = x.shape
    Cout = w.shape[2]
    lpad = 128 * pl.cdiv(W + 1, 128)     # halo pad, 128-aligned for unmasked store

    kernel = functools.partial(_conv_bn_stats_kernel, H=H, W=W,
                               apply_input_act=apply_input_act)
    # NOTE: for production H/W this would tile spatially (row strips + 2-row
    # halo) and set vmem_limit_bytes (v7x has 64 MiB VMEM); at these sizes one
    # whole image per grid step is tiny.
    return pl.pallas_call(
        kernel,
        out_shape=(
            jax.ShapeDtypeStruct((N, Cout, HW), jnp.float32),
            jax.ShapeDtypeStruct((N, Cout, 1), jnp.float32),
            jax.ShapeDtypeStruct((N, Cout, 1), jnp.float32),
        ),
        grid_spec=pltpu.PrefetchScalarGridSpec(
            num_scalar_prefetch=0,
            grid=(N,),
            in_specs=[
                pl.BlockSpec((1, Cin, HW), lambda n: (n, 0, 0)),
                pl.BlockSpec((3, 3, Cout, Cin), lambda n: (0, 0, 0, 0)),
                pl.BlockSpec((Cin, 1), lambda n: (0, 0)),
                pl.BlockSpec((Cin, 1), lambda n: (0, 0)),
            ],
            out_specs=[
                pl.BlockSpec((1, Cout, HW), lambda n: (n, 0, 0)),
                pl.BlockSpec((1, Cout, 1), lambda n: (n, 0, 0)),
                pl.BlockSpec((1, Cout, 1), lambda n: (n, 0, 0)),
            ],
            scratch_shapes=[pltpu.VMEM((Cin, HW + 2 * lpad), jnp.float32)],
        ),
        compiler_params=pltpu.CompilerParams(
            dimension_semantics=("parallel",)),   # per-image partials -> batch parallel
    )(x, w, scale, bias)


# -----------------------------------------------------------------------------
# Final fused affine BatchNorm (pre-folded scale/bias) + LeakyReLU epilogue.
# -----------------------------------------------------------------------------
def _bn_lrelu_kernel(y_ref, scale_ref, bias_ref, o_ref):
    o_ref[0] = _leaky_relu(y_ref[0] * scale_ref[...] + bias_ref[...])


def bn_lrelu(y, scale, bias):
    N, C, HW = y.shape
    return pl.pallas_call(
        _bn_lrelu_kernel,
        out_shape=jax.ShapeDtypeStruct((N, C, HW), jnp.float32),
        grid_spec=pltpu.PrefetchScalarGridSpec(
            num_scalar_prefetch=0,
            grid=(N,),
            in_specs=[
                pl.BlockSpec((1, C, HW), lambda n: (n, 0, 0)),
                pl.BlockSpec((C, 1), lambda n: (0, 0)),
                pl.BlockSpec((C, 1), lambda n: (0, 0)),
            ],
            out_specs=pl.BlockSpec((1, C, HW), lambda n: (n, 0, 0)),
        ),
        compiler_params=pltpu.CompilerParams(
            dimension_semantics=("parallel",)),
    )(y, scale, bias)


def _fold_bn(ssum, ssq, gamma, beta, count):
    """Reduce per-image partial stats and fold BN into a per-channel scale/bias."""
    total = jnp.sum(ssum[:, :, 0], axis=0)           # (C,)
    total_sq = jnp.sum(ssq[:, :, 0], axis=0)         # (C,)
    mean = total / count
    # E[x^2] - E[x]^2 can dip slightly negative from cancellation -> clamp.
    var = jnp.maximum(total_sq / count - mean * mean, 0.0)
    scale = gamma * lax.rsqrt(var + BN_EPS)
    bias = beta - mean * scale
    return scale.reshape(-1, 1), bias.reshape(-1, 1)


# -----------------------------------------------------------------------------
# DoubleConv forward (use_dropout=False path; PyTorch module default).
# -----------------------------------------------------------------------------
@jax.jit
def double_conv(x_nchw, w1, g1, b1, w2, g2, b2):
    N, Cin, H, W = x_nchw.shape
    HW = H * W
    C2 = w2.shape[0]

    x = x_nchw.reshape(N, Cin, HW)                   # free reshape (already NCHW)
    w1k = jnp.transpose(w1, (2, 3, 0, 1))            # (O,I,kH,kW) -> (kH,kW,O,I)
    w2k = jnp.transpose(w2, (2, 3, 0, 1))

    # Layer 1: conv + batch stats.
    one = jnp.ones((Cin, 1), jnp.float32)
    zero = jnp.zeros((Cin, 1), jnp.float32)
    y1, s1, q1 = conv_bn_stats(x, w1k, one, zero, H=H, W=W,
                               apply_input_act=False)
    scale1, bias1 = _fold_bn(s1, q1, g1, b1, N * HW)

    # Layer 2: BN1+LeakyReLU fused into the conv prologue, then conv + stats.
    y2, s2, q2 = conv_bn_stats(y1, w2k, scale1, bias1, H=H, W=W,
                               apply_input_act=True)
    scale2, bias2 = _fold_bn(s2, q2, g2, b2, N * HW)

    # Final BN2 + LeakyReLU epilogue.
    out = bn_lrelu(y2, scale2, bias2)
    return out.reshape(N, C2, H, W)                  # already NCHW, no transpose


# -----------------------------------------------------------------------------
# Pure-JAX reference for a sanity check.
# -----------------------------------------------------------------------------
def double_conv_ref(x_nchw, w1, g1, b1, w2, g2, b2):
    x = x_nchw
    for w, g, b in ((w1, g1, b1), (w2, g2, b2)):
        y = lax.conv_general_dilated(
            x, w, window_strides=(1, 1), padding="SAME",
            dimension_numbers=("NCHW", "OIHW", "NCHW"))
        mean = jnp.mean(y, axis=(0, 2, 3), keepdims=True)
        var = jnp.mean((y - mean) ** 2, axis=(0, 2, 3), keepdims=True)
        z = ((y - mean) * lax.rsqrt(var + BN_EPS) * g.reshape(1, -1, 1, 1)
             + b.reshape(1, -1, 1, 1))
        x = jnp.where(z >= 0, z, NEG_SLOPE * z)
    return x


if __name__ == "__main__":
    key = jax.random.PRNGKey(0)
    k_x, k_w1, k_w2 = jax.random.split(key, 3)

    N, Cin, Cout, H, W = 2, 4, 8, 16, 16

    # Input in PyTorch's NCHW convention.
    x = jax.random.normal(k_x, (N, Cin, H, W), dtype=jnp.float32)

    # Conv weights (bias=False) in PyTorch layout (O, I, kH, kW).
    w1 = 0.1 * jax.random.normal(k_w1, (Cout, Cin, 3, 3), dtype=jnp.float32)
    w2 = 0.1 * jax.random.normal(k_w2, (Cout, Cout, 3, 3), dtype=jnp.float32)

    # BatchNorm affine params (PyTorch default init: gamma=1, beta=0).
    g1 = jnp.ones((Cout,), jnp.float32)
    b1 = jnp.zeros((Cout,), jnp.float32)
    g2 = jnp.ones((Cout,), jnp.float32)
    b2 = jnp.zeros((Cout,), jnp.float32)

    out = jax.block_until_ready(double_conv(x, w1, g1, b1, w2, g2, b2))
    ref = double_conv_ref(x, w1, g1, b1, w2, g2, b2)

    np.testing.assert_allclose(np.asarray(out), np.asarray(ref),
                               rtol=2e-2, atol=2e-2)
    assert out.shape == (N, Cout, H, W)
    print("KERNEL_OK")
</pallas_src>

<mosaic_0001>
module attributes {stable_mosaic.version = 11 : i64} {
  func.func @_conv_bn_stats_kernel(%arg0: i32, %arg1: memref<1x4x256xf32, #tpu.memory_space<vmem>>, %arg2: memref<3x3x8x4xf32, #tpu.memory_space<vmem>>, %arg3: memref<4x1xf32, #tpu.memory_space<vmem>>, %arg4: memref<4x1xf32, #tpu.memory_space<vmem>>, %arg5: memref<1x8x256xf32, #tpu.memory_space<vmem>>, %arg6: memref<1x8x1xf32, #tpu.memory_space<vmem>>, %arg7: memref<1x8x1xf32, #tpu.memory_space<vmem>>, %arg8: memref<4x512xf32, #tpu.memory_space<vmem>>) attributes {dimension_semantics = [#tpu.dimension_semantics<parallel>], iteration_bounds = array<i64: 2>, scalar_prefetch = 0 : i64, scratch_operands = 1 : i64, tpu.core_type = #tpu.core_type<tc>, window_params = [{transform_indices = @transform_0, window_bounds = array<i64: 1, 4, 256>}, {pipeline_mode = #tpu.pipeline_mode<synchronous>, transform_indices = @transform_1, window_bounds = array<i64: 3, 3, 8, 4>}, {pipeline_mode = #tpu.pipeline_mode<synchronous>, transform_indices = @transform_2, window_bounds = array<i64: 4, 1>}, {pipeline_mode = #tpu.pipeline_mode<synchronous>, transform_indices = @transform_3, window_bounds = array<i64: 4, 1>}, {transform_indices = @transform_4, window_bounds = array<i64: 1, 8, 256>}, {transform_indices = @transform_5, window_bounds = array<i64: 1, 8, 1>}, {transform_indices = @transform_6, window_bounds = array<i64: 1, 8, 1>}]} {
    %c0 = arith.constant 0 : index
    %c0_0 = arith.constant 0 : index
    %c0_1 = arith.constant 0 : index
    %0 = vector.load %arg1[%c0, %c0_0, %c0_1] : memref<1x4x256xf32, #tpu.memory_space<vmem>>, vector<1x4x256xf32>
    %1 = vector.shape_cast %0 : vector<1x4x256xf32> to vector<4x256xf32>
    %cst = arith.constant 0.000000e+00 : f32
    %2 = vector.broadcast %cst : f32 to vector<4x512xf32>
    %c0_2 = arith.constant 0 : index
    %c0_3 = arith.constant 0 : index
    %3 = vector.load %arg8[%c0_2, %c0_3] : memref<4x512xf32, #tpu.memory_space<vmem>>, vector<4x512xf32>
    tpu.vector_store %arg8[%c0_2, %c0_3], %2 {strides = array<i32>} : memref<4x512xf32, #tpu.memory_space<vmem>>, vector<4x512xf32>,
    %c0_4 = arith.constant 0 : index
    %c128 = arith.constant 128 : index
    %4 = vector.load %arg8[%c0_4, %c128] : memref<4x512xf32, #tpu.memory_space<vmem>>, vector<4x256xf32>
    tpu.vector_store %arg8[%c0_4, %c128], %1 {strides = array<i32>} : memref<4x512xf32, #tpu.memory_space<vmem>>, vector<4x256xf32>,
    %5 = tpu.iota {dimensions = array<i32: 1>} : vector<1x256xi32>
    %c15_i32 = arith.constant 15 : i32
    %6 = vector.broadcast %c15_i32 : i32 to vector<1x256xi32>
    %7 = arith.andi %5, %6 : vector<1x256xi32>
    %cst_5 = arith.constant 0.000000e+00 : f32
    %8 = vector.broadcast %cst_5 : f32 to vector<8x256xf32>
    %c0_6 = arith.constant 0 : index
    %c111 = arith.constant 111 : index
    %9 = vector.load %arg8[%c0_6, %c111] : memref<4x512xf32, #tpu.memory_space<vmem>>, vector<4x256xf32>
    %c1_i32 = arith.constant 1 : i32
    %10 = vector.broadcast %c1_i32 : i32 to vector<1x256xi32>
    %11 = arith.cmpi sge, %7, %10 : vector<1x256xi32>
    %cst_7 = arith.constant 0.000000e+00 : f32
    %12 = vector.shape_cast %11 : vector<1x256xi1> to vector<1x256xi1>
    %13 = vector.broadcast %12 : vector<1x256xi1> to vector<4x256xi1>
    %14 = vector.broadcast %cst_7 : f32 to vector<4x256xf32>
    %15 = arith.select %13, %9, %14 : vector<4x256xi1>, vector<4x256xf32>
    %c0_8 = arith.constant 0 : index
    %c0_9 = arith.constant 0 : index
    %c0_10 = arith.constant 0 : index
    %c0_11 = arith.constant 0 : index
    %16 = vector.load %arg2[%c0_8, %c0_9, %c0_10, %c0_11] : memref<3x3x8x4xf32, #tpu.memory_space<vmem>>, vector<1x1x8x4xf32>
    %17 = vector.shape_cast %16 : vector<1x1x8x4xf32> to vector<8x4xf32>
    %cst_12 = arith.constant dense<0.000000e+00> : vector<8x256xf32>
    %18 = tpu.matmul %17, %15, %cst_12 {dimension_numbers = #tpu.dot_dimension_numbers<[1], [0], [0], [1], [0, 0, 1, 1], [], []>} : vector<8x4xf32>, vector<4x256xf32>, vector<8x256xf32> -> vector<8x256xf32>
    %19 = arith.addf %8, %18 : vector<8x256xf32>
    %c0_13 = arith.constant 0 : index
    %c112 = arith.constant 112 : index
    %20 = vector.load %arg8[%c0_13, %c112] : memref<4x512xf32, #tpu.memory_space<vmem>>, vector<4x256xf32>
    %c0_14 = arith.constant 0 : index
    %c1 = arith.constant 1 : index
    %c0_15 = arith.constant 0 : index
    %c0_16 = arith.constant 0 : index
    %21 = vector.load %arg2[%c0_14, %c1, %c0_15, %c0_16] : memref<3x3x8x4xf32, #tpu.memory_space<vmem>>, vector<1x1x8x4xf32>
    %22 = vector.shape_cast %21 : vector<1x1x8x4xf32> to vector<8x4xf32>
    %cst_17 = arith.constant dense<0.000000e+00> : vector<8x256xf32>
    %23 = tpu.matmul %22, %20, %cst_17 {dimension_numbers = #tpu.dot_dimension_numbers<[1], [0], [0], [1], [0, 0, 1, 1], [], []>} : vector<8x4xf32>, vector<4x256xf32>, vector<8x256xf32> -> vector<8x256xf32>
    %24 = arith.addf %19, %23 : vector<8x256xf32>
    %c0_18 = arith.constant 0 : index
    %c113 = arith.constant 113 : index
    %25 = vector.load %arg8[%c0_18, %c113] : memref<4x512xf32, #tpu.memory_space<vmem>>, vector<4x256xf32>
    %c14_i32 = arith.constant 14 : i32
    %26 = vector.broadcast %c14_i32 : i32 to vector<1x256xi32>
    %27 = arith.cmpi sle, %7, %26 : vector<1x256xi32>
    %cst_19 = arith.constant 0.000000e+00 : f32
    %28 = vector.shape_cast %27 : vector<1x256xi1> to vector<1x256xi1>
    %29 = vector.broadcast %28 : vector<1x256xi1> to vector<4x256xi1>
    %30 = vector.broadcast %cst_19 : f32 to vector<4x256xf32>
    %31 = arith.select %29, %25, %30 : vector<4x256xi1>, vector<4x256xf32>
    %c0_20 = arith.constant 0 : index
    %c2 = arith.constant 2 : index
    %c0_21 = arith.constant 0 : index
    %c0_22 = arith.constant 0 : index
    %32 = vector.load %arg2[%c0_20, %c2, %c0_21, %c0_22] : memref<3x3x8x4xf32, #tpu.memory_space<vmem>>, vector<1x1x8x4xf32>
    %33 = vector.shape_cast %32 : vector<1x1x8x4xf32> to vector<8x4xf32>
    %cst_23 = arith.constant dense<0.000000e+00> : vector<8x256xf32>
    %34 = tpu.matmul %33, %31, %cst_23 {dimension_numbers = #tpu.dot_dimension_numbers<[1], [0], [0], [1], [0, 0, 1, 1], [], []>} : vector<8x4xf32>, vector<4x256xf32>, vector<8x256xf32> -> vector<8x256xf32>
    %35 = arith.addf %24, %34 : vector<8x256xf32>
    %c0_24 = arith.constant 0 : index
    %c127 = arith.constant 127 : index
    %36 = vector.load %arg8[%c0_24, %c127] : memref<4x512xf32, #tpu.memory_space<vmem>>, vector<4x256xf32>
    %c1_i32_25 = arith.constant 1 : i32
    %37 = vector.broadcast %c1_i32_25 : i32 to vector<1x256xi32>
    %38 = arith.cmpi sge, %7, %37 : vector<1x256xi32>
    %cst_26 = arith.constant 0.000000e+00 : f32
    %39 = vector.shape_cast %38 : vector<1x256xi1> to vector<1x256xi1>
    %40 = vector.broadcast %39 : vector<1x256xi1> to vector<4x256xi1>
    %41 = vector.broadcast %cst_26 : f32 to vector<4x256xf32>
    %42 = arith.select %40, %36, %41 : vector<4x256xi1>, vector<4x256xf32>
    %c1_27 = arith.constant 1 : index
    %c0_28 = arith.constant 0 : index
    %c0_29 = arith.constant 0 : index
    %c0_30 = arith.constant 0 : index
    %43 = vector.load %arg2[%c1_27, %c0_28, %c0_29, %c0_30] : memref<3x3x8x4xf32, #tpu.memory_space<vmem>>, vector<1x1x8x4xf32>
    %44 = vector.shape_cast %43 : vector<1x1x8x4xf32> to vector<8x4xf32>
    %cst_31 = arith.constant dense<0.000000e+00> : vector<8x256xf32>
    %45 = tpu.matmul %44, %42, %cst_31 {dimension_numbers = #tpu.dot_dimension_numbers<[1], [0], [0], [1], [0, 0, 1, 1], [], []>} : vector<8x4xf32>, vector<4x256xf32>, vector<8x256xf32> -> vector<8x256xf32>
    %46 = arith.addf %35, %45 : vector<8x256xf32>
    %c0_32 = arith.constant 0 : index
    %c128_33 = arith.constant 128 : index
    %47 = vector.load %arg8[%c0_32, %c128_33] : memref<4x512xf32, #tpu.memory_space<vmem>>, vector<4x256xf32>
    %c1_34 = arith.constant 1 : index
    %c1_35 = arith.constant 1 : index
    %c0_36 = arith.constant 0 : index
    %c0_37 = arith.constant 0 : index
    %48 = vector.load %arg2[%c1_34, %c1_35, %c0_36, %c0_37] : memref<3x3x8x4xf32, #tpu.memory_space<vmem>>, vector<1x1x8x4xf32>
    %49 = vector.shape_cast %48 : vector<1x1x8x4xf32> to vector<8x4xf32>
    %cst_38 = arith.constant dense<0.000000e+00> : vector<8x256xf32>
    %50 = tpu.matmul %49, %47, %cst_38 {dimension_numbers = #tpu.dot_dimension_numbers<[1], [0], [0], [1], [0, 0, 1, 1], [], []>} : vector<8x4xf32>, vector<4x256xf32>, vector<8x256xf32> -> vector<8x256xf32>
    %51 = arith.addf %46, %50 : vector<8x256xf32>
    %c0_39 = arith.constant 0 : index
    %c129 = arith.constant 129 : index
    %52 = vector.load %arg8[%c0_39, %c129] : memref<4x512xf32, #tpu.memory_space<vmem>>, vector<4x256xf32>
    %c14_i32_40 = arith.constant 14 : i32
    %53 = vector.broadcast %c14_i32_40 : i32 to vector<1x256xi32>
    %54 = arith.cmpi sle, %7, %53 : vector<1x256xi32>
    %cst_41 = arith.constant 0.000000e+00 : f32
    %55 = vector.shape_cast %54 : vector<1x256xi1> to vector<1x256xi1>
    %56 = vector.broadcast %55 : vector<1x256xi1> to vector<4x256xi1>
    %57 = vector.broadcast %cst_41 : f32 to vector<4x256xf32>
    %58 = arith.select %56, %52, %57 : vector<4x256xi1>, vector<4x256xf32>
    %c1_42 = arith.constant 1 : index
    %c2_43 = arith.constant 2 : index
    %c0_44 = arith.constant 0 : index
    %c0_45 = arith.constant 0 : index
    %59 = vector.load %arg2[%c1_42, %c2_43, %c0_44, %c0_45] : memref<3x3x8x4xf32, #tpu.memory_space<vmem>>, vector<1x1x8x4xf32>
    %60 = vector.shape_cast %59 : vector<1x1x8x4xf32> to vector<8x4xf32>
    %cst_46 = arith.constant dense<0.000000e+00> : vector<8x256xf32>
    %61 = tpu.matmul %60, %58, %cst_46 {dimension_numbers = #tpu.dot_dimension_numbers<[1], [0], [0], [1], [0, 0, 1, 1], [], []>} : vector<8x4xf32>, vector<4x256xf32>, vector<8x256xf32> -> vector<8x256xf32>
    %62 = arith.addf %51, %61 : vector<8x256xf32>
    %c0_47 = arith.constant 0 : index
    %c143 = arith.constant 143 : index
    %63 = vector.load %arg8[%c0_47, %c143] : memref<4x512xf32, #tpu.memory_space<vmem>>, vector<4x256xf32>
    %c1_i32_48 = arith.constant 1 : i32
    %64 = vector.broadcast %c1_i32_48 : i32 to vector<1x256xi32>
    %65 = arith.cmpi sge, %7, %64 : vector<1x256xi32>
    %cst_49 = arith.constant 0.000000e+00 : f32
    %66 = vector.shape_cast %65 : vector<1x256xi1> to vector<1x256xi1>
    %67 = vector.broadcast %66 : vector<1x256xi1> to vector<4x256xi1>
    %68 = vector.broadcast %cst_49 : f32 to vector<4x256xf32>
    %69 = arith.select %67, %63, %68 : vector<4x256xi1>, vector<4x256xf32>
    %c2_50 = arith.constant 2 : index
    %c0_51 = arith.constant 0 : index
    %c0_52 = arith.constant 0 : index
    %c0_53 = arith.constant 0 : index
    %70 = vector.load %arg2[%c2_50, %c0_51, %c0_52, %c0_53] : memref<3x3x8x4xf32, #tpu.memory_space<vmem>>, vector<1x1x8x4xf32>
    %71 = vector.shape_cast %70 : vector<1x1x8x4xf32> to vector<8x4xf32>
    %cst_54 = arith.constant dense<0.000000e+00> : vector<8x256xf32>
    %72 = tpu.matmul %71, %69, %cst_54 {dimension_numbers = #tpu.dot_dimension_numbers<[1], [0], [0], [1], [0, 0, 1, 1], [], []>} : vector<8x4xf32>, vector<4x256xf32>, vector<8x256xf32> -> vector<8x256xf32>
    %73 = arith.addf %62, %72 : vector<8x256xf32>
    %c0_55 = arith.constant 0 : index
    %c144 = arith.constant 144 : index
    %74 = vector.load %arg8[%c0_55, %c144] : memref<4x512xf32, #tpu.memory_space<vmem>>, vector<4x256xf32>
    %c2_56 = arith.constant 2 : index
    %c1_57 = arith.constant 1 : index
    %c0_58 = arith.constant 0 : index
    %c0_59 = arith.constant 0 : index
    %75 = vector.load %arg2[%c2_56, %c1_57, %c0_58, %c0_59] : memref<3x3x8x4xf32, #tpu.memory_space<vmem>>, vector<1x1x8x4xf32>
    %76 = vector.shape_cast %75 : vector<1x1x8x4xf32> to vector<8x4xf32>
    %cst_60 = arith.constant dense<0.000000e+00> : vector<8x256xf32>
    %77 = tpu.matmul %76, %74, %cst_60 {dimension_numbers = #tpu.dot_dimension_numbers<[1], [0], [0], [1], [0, 0, 1, 1], [], []>} : vector<8x4xf32>, vector<4x256xf32>, vector<8x256xf32> -> vector<8x256xf32>
    %78 = arith.addf %73, %77 : vector<8x256xf32>
    %c0_61 = arith.constant 0 : index
    %c145 = arith.constant 145 : index
    %79 = vector.load %arg8[%c0_61, %c145] : memref<4x512xf32, #tpu.memory_space<vmem>>, vector<4x256xf32>
    %c14_i32_62 = arith.constant 14 : i32
    %80 = vector.broadcast %c14_i32_62 : i32 to vector<1x256xi32>
    %81 = arith.cmpi sle, %7, %80 : vector<1x256xi32>
    %cst_63 = arith.constant 0.000000e+00 : f32
    %82 = vector.shape_cast %81 : vector<1x256xi1> to vector<1x256xi1>
    %83 = vector.broadcast %82 : vector<1x256xi1> to vector<4x256xi1>
    %84 = vector.broadcast %cst_63 : f32 to vector<4x256xf32>
    %85 = arith.select %83, %79, %84 : vector<4x256xi1>, vector<4x256xf32>
    %c2_64 = arith.constant 2 : index
    %c2_65 = arith.constant 2 : index
    %c0_66 = arith.constant 0 : index
    %c0_67 = arith.constant 0 : index
    %86 = vector.load %arg2[%c2_64, %c2_65, %c0_66, %c0_67] : memref<3x3x8x4xf32, #tpu.memory_space<vmem>>, vector<1x1x8x4xf32>
    %87 = vector.shape_cast %86 : vector<1x1x8x4xf32> to vector<8x4xf32>
    %cst_68 = arith.constant dense<0.000000e+00> : vector<8x256xf32>
    %88 = tpu.matmul %87, %85, %cst_68 {dimension_numbers = #tpu.dot_dimension_numbers<[1], [0], [0], [1], [0, 0, 1, 1], [], []>} : vector<8x4xf32>, vector<4x256xf32>, vector<8x256xf32> -> vector<8x256xf32>
    %89 = arith.addf %78, %88 : vector<8x256xf32>
    %c0_69 = arith.constant 0 : index
    %c0_70 = arith.constant 0 : index
    %c0_71 = arith.constant 0 : index
    %90 = vector.load %arg5[%c0_69, %c0_70, %c0_71] : memref<1x8x256xf32, #tpu.memory_space<vmem>>, vector<1x8x256xf32>
    %91 = vector.shape_cast %90 : vector<1x8x256xf32> to vector<8x256xf32>
    %92 = vector.shape_cast %89 : vector<8x256xf32> to vector<1x8x256xf32>
    tpu.vector_store %arg5[%c0_69, %c0_70, %c0_71], %92 {strides = array<i32>} : memref<1x8x256xf32, #tpu.memory_space<vmem>>, vector<1x8x256xf32>,
    %cst_72 = arith.constant dense<0.000000e+00> : vector<8xf32>
    %93 = vector.multi_reduction <add>, %89, %cst_72 [1] : vector<8x256xf32> to vector<8xf32>
    %94 = vector.shape_cast %93 : vector<8xf32> to vector<8x1xf32>
    %c0_73 = arith.constant 0 : index
    %c0_74 = arith.constant 0 : index
    %c0_75 = arith.constant 0 : index
    %95 = vector.load %arg6[%c0_73, %c0_74, %c0_75] : memref<1x8x1xf32, #tpu.memory_space<vmem>>, vector<1x8x1xf32>
    %96 = vector.shape_cast %95 : vector<1x8x1xf32> to vector<8x1xf32>
    %97 = vector.shape_cast %94 : vector<8x1xf32> to vector<1x8x1xf32>
    tpu.vector_store %arg6[%c0_73, %c0_74, %c0_75], %97 {strides = array<i32>} : memref<1x8x1xf32, #tpu.memory_space<vmem>>, vector<1x8x1xf32>,
    %98 = arith.mulf %89, %89 : vector<8x256xf32>
    %cst_76 = arith.constant dense<0.000000e+00> : vector<8xf32>
    %99 = vector.multi_reduction <add>, %98, %cst_76 [1] : vector<8x256xf32> to vector<8xf32>
    %100 = vector.shape_cast %99 : vector<8xf32> to vector<8x1xf32>
    %c0_77 = arith.constant 0 : index
    %c0_78 = arith.constant 0 : index
    %c0_79 = arith.constant 0 : index
    %101 = vector.load %arg7[%c0_77, %c0_78, %c0_79] : memref<1x8x1xf32, #tpu.memory_space<vmem>>, vector<1x8x1xf32>
    %102 = vector.shape_cast %101 : vector<1x8x1xf32> to vector<8x1xf32>
    %103 = vector.shape_cast %100 : vector<8x1xf32> to vector<1x8x1xf32>
    tpu.vector_store %arg7[%c0_77, %c0_78, %c0_79], %103 {strides = array<i32>} : memref<1x8x1xf32, #tpu.memory_space<vmem>>, vector<1x8x1xf32>,
    return
  }
  func.func @transform_0(%arg0: i32) -> (i32, i32, i32) {
    %c0_i32 = arith.constant 0 : i32
    %c0_i32_0 = arith.constant 0 : i32
    %c0_i32_1 = arith.constant 0 : i32
    return %arg0, %c0_i32, %c0_i32_0 : i32, i32, i32
  }
  func.func @transform_1(%arg0: i32) -> (i32, i32, i32, i32) {
    %c0_i32 = arith.constant 0 : i32
    %c0_i32_0 = arith.constant 0 : i32
    %c0_i32_1 = arith.constant 0 : i32
    %c0_i32_2 = arith.constant 0 : i32
    %c0_i32_3 = arith.constant 0 : i32
    return %c0_i32, %c0_i32_0, %c0_i32_1, %c0_i32_2 : i32, i32, i32, i32
  }
  func.func @transform_2(%arg0: i32) -> (i32, i32) {
    %c0_i32 = arith.constant 0 : i32
    %c0_i32_0 = arith.constant 0 : i32
    %c0_i32_1 = arith.constant 0 : i32
    return %c0_i32, %c0_i32_0 : i32, i32
  }
  func.func @transform_3(%arg0: i32) -> (i32, i32) {
    %c0_i32 = arith.constant 0 : i32
    %c0_i32_0 = arith.constant 0 : i32
    %c0_i32_1 = arith.constant 0 : i32
    return %c0_i32, %c0_i32_0 : i32, i32
  }
  func.func @transform_4(%arg0: i32) -> (i32, i32, i32) {
    %c0_i32 = arith.constant 0 : i32
    %c0_i32_0 = arith.constant 0 : i32
    %c0_i32_1 = arith.constant 0 : i32
    return %arg0, %c0_i32, %c0_i32_0 : i32, i32, i32
  }
  func.func @transform_5(%arg0: i32) -> (i32, i32, i32) {
    %c0_i32 = arith.constant 0 : i32
    %c0_i32_0 = arith.constant 0 : i32
    %c0_i32_1 = arith.constant 0 : i32
    return %arg0, %c0_i32, %c0_i32_0 : i32, i32, i32
  }
  func.func @transform_6(%arg0: i32) -> (i32, i32, i32) {
    %c0_i32 = arith.constant 0 : i32
    %c0_i32_0 = arith.constant 0 : i32
    %c0_i32_1 = arith.constant 0 : i32
    return %arg0, %c0_i32, %c0_i32_0 : i32, i32, i32
  }
}

module attributes {stable_mosaic.version = 11 : i64} {
  func.func @_conv_bn_stats_kernel(%arg0: i32, %arg1: memref<1x8x256xf32, #tpu.memory_space<vmem>>, %arg2: memref<3x3x8x8xf32, #tpu.memory_space<vmem>>, %arg3: memref<8x1xf32, #tpu.memory_space<vmem>>, %arg4: memref<8x1xf32, #tpu.memory_space<vmem>>, %arg5: memref<1x8x256xf32, #tpu.memory_space<vmem>>, %arg6: memref<1x8x1xf32, #tpu.memory_space<vmem>>, %arg7: memref<1x8x1xf32, #tpu.memory_space<vmem>>, %arg8: memref<8x512xf32, #tpu.memory_space<vmem>>) attributes {dimension_semantics = [#tpu.dimension_semantics<parallel>], iteration_bounds = array<i64: 2>, scalar_prefetch = 0 : i64, scratch_operands = 1 : i64, tpu.core_type = #tpu.core_type<tc>, window_params = [{transform_indices = @transform_0, window_bounds = array<i64: 1, 8, 256>}, {pipeline_mode = #tpu.pipeline_mode<synchronous>, transform_indices = @transform_1, window_bounds = array<i64: 3, 3, 8, 8>}, {pipeline_mode = #tpu.pipeline_mode<synchronous>, transform_indices = @transform_2, window_bounds = array<i64: 8, 1>}, {pipeline_mode = #tpu.pipeline_mode<synchronous>, transform_indices = @transform_3, window_bounds = array<i64: 8, 1>}, {transform_indices = @transform_4, window_bounds = array<i64: 1, 8, 256>}, {transform_indices = @transform_5, window_bounds = array<i64: 1, 8, 1>}, {transform_indices = @transform_6, window_bounds = array<i64: 1, 8, 1>}]} {
    %c0 = arith.constant 0 : index
    %c0_0 = arith.constant 0 : index
    %c0_1 = arith.constant 0 : index
    %0 = vector.load %arg1[%c0, %c0_0, %c0_1] : memref<1x8x256xf32, #tpu.memory_space<vmem>>, vector<1x8x256xf32>
    %1 = vector.shape_cast %0 : vector<1x8x256xf32> to vector<8x256xf32>
    %c0_2 = arith.constant 0 : index
    %c0_3 = arith.constant 0 : index
    %2 = vector.load %arg3[%c0_2, %c0_3] : memref<8x1xf32, #tpu.memory_space<vmem>>, vector<8x1xf32>
    %3 = vector.broadcast %2 : vector<8x1xf32> to vector<8x256xf32>
    %4 = arith.mulf %1, %3 : vector<8x256xf32>
    %c0_4 = arith.constant 0 : index
    %c0_5 = arith.constant 0 : index
    %5 = vector.load %arg4[%c0_4, %c0_5] : memref<8x1xf32, #tpu.memory_space<vmem>>, vector<8x1xf32>
    %6 = vector.broadcast %5 : vector<8x1xf32> to vector<8x256xf32>
    %7 = arith.addf %4, %6 : vector<8x256xf32>
    %cst = arith.constant 0.000000e+00 : f32
    %8 = vector.broadcast %cst : f32 to vector<8x256xf32>
    %9 = arith.cmpf oge, %7, %8 : vector<8x256xf32>
    %cst_6 = arith.constant 0.00999999977 : f32
    %10 = vector.broadcast %cst_6 : f32 to vector<8x256xf32>
    %11 = arith.mulf %10, %7 : vector<8x256xf32>
    %12 = arith.select %9, %7, %11 : vector<8x256xi1>, vector<8x256xf32>
    %cst_7 = arith.constant 0.000000e+00 : f32
    %13 = vector.broadcast %cst_7 : f32 to vector<8x512xf32>
    %c0_8 = arith.constant 0 : index
    %c0_9 = arith.constant 0 : index
    %14 = vector.load %arg8[%c0_8, %c0_9] : memref<8x512xf32, #tpu.memory_space<vmem>>, vector<8x512xf32>
    tpu.vector_store %arg8[%c0_8, %c0_9], %13 {strides = array<i32>} : memref<8x512xf32, #tpu.memory_space<vmem>>, vector<8x512xf32>,
    %c0_10 = arith.constant 0 : index
    %c128 = arith.constant 128 : index
    %15 = vector.load %arg8[%c0_10, %c128] : memref<8x512xf32, #tpu.memory_space<vmem>>, vector<8x256xf32>
    tpu.vector_store %arg8[%c0_10, %c128], %12 {strides = array<i32>} : memref<8x512xf32, #tpu.memory_space<vmem>>, vector<8x256xf32>,
    %16 = tpu.iota {dimensions = array<i32: 1>} : vector<1x256xi32>
    %c15_i32 = arith.constant 15 : i32
    %17 = vector.broadcast %c15_i32 : i32 to vector<1x256xi32>
    %18 = arith.andi %16, %17 : vector<1x256xi32>
    %cst_11 = arith.constant 0.000000e+00 : f32
    %19 = vector.broadcast %cst_11 : f32 to vector<8x256xf32>
    %c0_12 = arith.constant 0 : index
    %c111 = arith.constant 111 : index
    %20 = vector.load %arg8[%c0_12, %c111] : memref<8x512xf32, #tpu.memory_space<vmem>>, vector<8x256xf32>
    %c1_i32 = arith.constant 1 : i32
    %21 = vector.broadcast %c1_i32 : i32 to vector<1x256xi32>
    %22 = arith.cmpi sge, %18, %21 : vector<1x256xi32>
    %cst_13 = arith.constant 0.000000e+00 : f32
    %23 = vector.shape_cast %22 : vector<1x256xi1> to vector<1x256xi1>
    %24 = vector.broadcast %23 : vector<1x256xi1> to vector<8x256xi1>
    %25 = vector.broadcast %cst_13 : f32 to vector<8x256xf32>
    %26 = arith.select %24, %20, %25 : vector<8x256xi1>, vector<8x256xf32>
    %c0_14 = arith.constant 0 : index
    %c0_15 = arith.constant 0 : index
    %c0_16 = arith.constant 0 : index
    %c0_17 = arith.constant 0 : index
    %27 = vector.load %arg2[%c0_14, %c0_15, %c0_16, %c0_17] : memref<3x3x8x8xf32, #tpu.memory_space<vmem>>, vector<1x1x8x8xf32>
    %28 = vector.shape_cast %27 : vector<1x1x8x8xf32> to vector<8x8xf32>
    %cst_18 = arith.constant dense<0.000000e+00> : vector<8x256xf32>
    %29 = tpu.matmul %28, %26, %cst_18 {dimension_numbers = #tpu.dot_dimension_numbers<[1], [0], [0], [1], [0, 0, 1, 1], [], []>} : vector<8x8xf32>, vector<8x256xf32>, vector<8x256xf32> -> vector<8x256xf32>
    %30 = arith.addf %19, %29 : vector<8x256xf32>
    %c0_19 = arith.constant 0 : index
    %c112 = arith.constant 112 : index
    %31 = vector.load %arg8[%c0_19, %c112] : memref<8x512xf32, #tpu.memory_space<vmem>>, vector<8x256xf32>
    %c0_20 = arith.constant 0 : index
    %c1 = arith.constant 1 : index
    %c0_21 = arith.constant 0 : index
    %c0_22 = arith.constant 0 : index
    %32 = vector.load %arg2[%c0_20, %c1, %c0_21, %c0_22] : memref<3x3x8x8xf32, #tpu.memory_space<vmem>>, vector<1x1x8x8xf32>
    %33 = vector.shape_cast %32 : vector<1x1x8x8xf32> to vector<8x8xf32>
    %cst_23 = arith.constant dense<0.000000e+00> : vector<8x256xf32>
    %34 = tpu.matmul %33, %31, %cst_23 {dimension_numbers = #tpu.dot_dimension_numbers<[1], [0], [0], [1], [0, 0, 1, 1], [], []>} : vector<8x8xf32>, vector<8x256xf32>, vector<8x256xf32> -> vector<8x256xf32>
    %35 = arith.addf %30, %34 : vector<8x256xf32>
    %c0_24 = arith.constant 0 : index
    %c113 = arith.constant 113 : index
    %36 = vector.load %arg8[%c0_24, %c113] : memref<8x512xf32, #tpu.memory_space<vmem>>, vector<8x256xf32>
    %c14_i32 = arith.constant 14 : i32
    %37 = vector.broadcast %c14_i32 : i32 to vector<1x256xi32>
    %38 = arith.cmpi sle, %18, %37 : vector<1x256xi32>
    %cst_25 = arith.constant 0.000000e+00 : f32
    %39 = vector.shape_cast %38 : vector<1x256xi1> to vector<1x256xi1>
    %40 = vector.broadcast %39 : vector<1x256xi1> to vector<8x256xi1>
    %41 = vector.broadcast %cst_25 : f32 to vector<8x256xf32>
    %42 = arith.select %40, %36, %41 : vector<8x256xi1>, vector<8x256xf32>
    %c0_26 = arith.constant 0 : index
    %c2 = arith.constant 2 : index
    %c0_27 = arith.constant 0 : index
    %c0_28 = arith.constant 0 : index
    %43 = vector.load %arg2[%c0_26, %c2, %c0_27, %c0_28] : memref<3x3x8x8xf32, #tpu.memory_space<vmem>>, vector<1x1x8x8xf32>
    %44 = vector.shape_cast %43 : vector<1x1x8x8xf32> to vector<8x8xf32>
    %cst_29 = arith.constant dense<0.000000e+00> : vector<8x256xf32>
    %45 = tpu.matmul %44, %42, %cst_29 {dimension_numbers = #tpu.dot_dimension_numbers<[1], [0], [0], [1], [0, 0, 1, 1], [], []>} : vector<8x8xf32>, vector<8x256xf32>, vector<8x256xf32> -> vector<8x256xf32>
    %46 = arith.addf %35, %45 : vector<8x256xf32>
    %c0_30 = arith.constant 0 : index
    %c127 = arith.constant 127 : index
    %47 = vector.load %arg8[%c0_30, %c127] : memref<8x512xf32, #tpu.memory_space<vmem>>, vector<8x256xf32>
    %c1_i32_31 = arith.constant 1 : i32
    %48 = vector.broadcast %c1_i32_31 : i32 to vector<1x256xi32>
    %49 = arith.cmpi sge, %18, %48 : vector<1x256xi32>
    %cst_32 = arith.constant 0.000000e+00 : f32
    %50 = vector.shape_cast %49 : vector<1x256xi1> to vector<1x256xi1>
    %51 = vector.broadcast %50 : vector<1x256xi1> to vector<8x256xi1>
    %52 = vector.broadcast %cst_32 : f32 to vector<8x256xf32>
    %53 = arith.select %51, %47, %52 : vector<8x256xi1>, vector<8x256xf32>
    %c1_33 = arith.constant 1 : index
    %c0_34 = arith.constant 0 : index
    %c0_35 = arith.constant 0 : index
    %c0_36 = arith.constant 0 : index
    %54 = vector.load %arg2[%c1_33, %c0_34, %c0_35, %c0_36] : memref<3x3x8x8xf32, #tpu.memory_space<vmem>>, vector<1x1x8x8xf32>
    %55 = vector.shape_cast %54 : vector<1x1x8x8xf32> to vector<8x8xf32>
    %cst_37 = arith.constant dense<0.000000e+00> : vector<8x256xf32>
    %56 = tpu.matmul %55, %53, %cst_37 {dimension_numbers = #tpu.dot_dimension_numbers<[1], [0], [0], [1], [0, 0, 1, 1], [], []>} : vector<8x8xf32>, vector<8x256xf32>, vector<8x256xf32> -> vector<8x256xf32>
    %57 = arith.addf %46, %56 : vector<8x256xf32>
    %c0_38 = arith.constant 0 : index
    %c128_39 = arith.constant 128 : index
    %58 = vector.load %arg8[%c0_38, %c128_39] : memref<8x512xf32, #tpu.memory_space<vmem>>, vector<8x256xf32>
    %c1_40 = arith.constant 1 : index
    %c1_41 = arith.constant 1 : index
    %c0_42 = arith.constant 0 : index
    %c0_43 = arith.constant 0 : index
    %59 = vector.load %arg2[%c1_40, %c1_41, %c0_42, %c0_43] : memref<3x3x8x8xf32, #tpu.memory_space<vmem>>, vector<1x1x8x8xf32>
    %60 = vector.shape_cast %59 : vector<1x1x8x8xf32> to vector<8x8xf32>
    %cst_44 = arith.constant dense<0.000000e+00> : vector<8x256xf32>
    %61 = tpu.matmul %60, %58, %cst_44 {dimension_numbers = #tpu.dot_dimension_numbers<[1], [0], [0], [1], [0, 0, 1, 1], [], []>} : vector<8x8xf32>, vector<8x256xf32>, vector<8x256xf32> -> vector<8x256xf32>
    %62 = arith.addf %57, %61 : vector<8x256xf32>
    %c0_45 = arith.constant 0 : index
    %c129 = arith.constant 129 : index
    %63 = vector.load %arg8[%c0_45, %c129] : memref<8x512xf32, #tpu.memory_space<vmem>>, vector<8x256xf32>
    %c14_i32_46 = arith.constant 14 : i32
    %64 = vector.broadcast %c14_i32_46 : i32 to vector<1x256xi32>
    %65 = arith.cmpi sle, %18, %64 : vector<1x256xi32>
    %cst_47 = arith.constant 0.000000e+00 : f32
    %66 = vector.shape_cast %65 : vector<1x256xi1> to vector<1x256xi1>
    %67 = vector.broadcast %66 : vector<1x256xi1> to vector<8x256xi1>
    %68 = vector.broadcast %cst_47 : f32 to vector<8x256xf32>
    %69 = arith.select %67, %63, %68 : vector<8x256xi1>, vector<8x256xf32>
    %c1_48 = arith.constant 1 : index
    %c2_49 = arith.constant 2 : index
    %c0_50 = arith.constant 0 : index
    %c0_51 = arith.constant 0 : index
    %70 = vector.load %arg2[%c1_48, %c2_49, %c0_50, %c0_51] : memref<3x3x8x8xf32, #tpu.memory_space<vmem>>, vector<1x1x8x8xf32>
    %71 = vector.shape_cast %70 : vector<1x1x8x8xf32> to vector<8x8xf32>
    %cst_52 = arith.constant dense<0.000000e+00> : vector<8x256xf32>
    %72 = tpu.matmul %71, %69, %cst_52 {dimension_numbers = #tpu.dot_dimension_numbers<[1], [0], [0], [1], [0, 0, 1, 1], [], []>} : vector<8x8xf32>, vector<8x256xf32>, vector<8x256xf32> -> vector<8x256xf32>
    %73 = arith.addf %62, %72 : vector<8x256xf32>
    %c0_53 = arith.constant 0 : index
    %c143 = arith.constant 143 : index
    %74 = vector.load %arg8[%c0_53, %c143] : memref<8x512xf32, #tpu.memory_space<vmem>>, vector<8x256xf32>
    %c1_i32_54 = arith.constant 1 : i32
    %75 = vector.broadcast %c1_i32_54 : i32 to vector<1x256xi32>
    %76 = arith.cmpi sge, %18, %75 : vector<1x256xi32>
    %cst_55 = arith.constant 0.000000e+00 : f32
    %77 = vector.shape_cast %76 : vector<1x256xi1> to vector<1x256xi1>
    %78 = vector.broadcast %77 : vector<1x256xi1> to vector<8x256xi1>
    %79 = vector.broadcast %cst_55 : f32 to vector<8x256xf32>
    %80 = arith.select %78, %74, %79 : vector<8x256xi1>, vector<8x256xf32>
    %c2_56 = arith.constant 2 : index
    %c0_57 = arith.constant 0 : index
    %c0_58 = arith.constant 0 : index
    %c0_59 = arith.constant 0 : index
    %81 = vector.load %arg2[%c2_56, %c0_57, %c0_58, %c0_59] : memref<3x3x8x8xf32, #tpu.memory_space<vmem>>, vector<1x1x8x8xf32>
    %82 = vector.shape_cast %81 : vector<1x1x8x8xf32> to vector<8x8xf32>
    %cst_60 = arith.constant dense<0.000000e+00> : vector<8x256xf32>
    %83 = tpu.matmul %82, %80, %cst_60 {dimension_numbers = #tpu.dot_dimension_numbers<[1], [0], [0], [1], [0, 0, 1, 1], [], []>} : vector<8x8xf32>, vector<8x256xf32>, vector<8x256xf32> -> vector<8x256xf32>
    %84 = arith.addf %73, %83 : vector<8x256xf32>
    %c0_61 = arith.constant 0 : index
    %c144 = arith.constant 144 : index
    %85 = vector.load %arg8[%c0_61, %c144] : memref<8x512xf32, #tpu.memory_space<vmem>>, vector<8x256xf32>
    %c2_62 = arith.constant 2 : index
    %c1_63 = arith.constant 1 : index
    %c0_64 = arith.constant 0 : index
    %c0_65 = arith.constant 0 : index
    %86 = vector.load %arg2[%c2_62, %c1_63, %c0_64, %c0_65] : memref<3x3x8x8xf32, #tpu.memory_space<vmem>>, vector<1x1x8x8xf32>
    %87 = vector.shape_cast %86 : vector<1x1x8x8xf32> to vector<8x8xf32>
    %cst_66 = arith.constant dense<0.000000e+00> : vector<8x256xf32>
    %88 = tpu.matmul %87, %85, %cst_66 {dimension_numbers = #tpu.dot_dimension_numbers<[1], [0], [0], [1], [0, 0, 1, 1], [], []>} : vector<8x8xf32>, vector<8x256xf32>, vector<8x256xf32> -> vector<8x256xf32>
    %89 = arith.addf %84, %88 : vector<8x256xf32>
    %c0_67 = arith.constant 0 : index
    %c145 = arith.constant 145 : index
    %90 = vector.load %arg8[%c0_67, %c145] : memref<8x512xf32, #tpu.memory_space<vmem>>, vector<8x256xf32>
    %c14_i32_68 = arith.constant 14 : i32
    %91 = vector.broadcast %c14_i32_68 : i32 to vector<1x256xi32>
    %92 = arith.cmpi sle, %18, %91 : vector<1x256xi32>
    %cst_69 = arith.constant 0.000000e+00 : f32
    %93 = vector.shape_cast %92 : vector<1x256xi1> to vector<1x256xi1>
    %94 = vector.broadcast %93 : vector<1x256xi1> to vector<8x256xi1>
    %95 = vector.broadcast %cst_69 : f32 to vector<8x256xf32>
    %96 = arith.select %94, %90, %95 : vector<8x256xi1>, vector<8x256xf32>
    %c2_70 = arith.constant 2 : index
    %c2_71 = arith.constant 2 : index
    %c0_72 = arith.constant 0 : index
    %c0_73 = arith.constant 0 : index
    %97 = vector.load %arg2[%c2_70, %c2_71, %c0_72, %c0_73] : memref<3x3x8x8xf32, #tpu.memory_space<vmem>>, vector<1x1x8x8xf32>
    %98 = vector.shape_cast %97 : vector<1x1x8x8xf32> to vector<8x8xf32>
    %cst_74 = arith.constant dense<0.000000e+00> : vector<8x256xf32>
    %99 = tpu.matmul %98, %96, %cst_74 {dimension_numbers = #tpu.dot_dimension_numbers<[1], [0], [0], [1], [0, 0, 1, 1], [], []>} : vector<8x8xf32>, vector<8x256xf32>, vector<8x256xf32> -> vector<8x256xf32>
    %100 = arith.addf %89, %99 : vector<8x256xf32>
    %c0_75 = arith.constant 0 : index
    %c0_76 = arith.constant 0 : index
    %c0_77 = arith.constant 0 : index
    %101 = vector.load %arg5[%c0_75, %c0_76, %c0_77] : memref<1x8x256xf32, #tpu.memory_space<vmem>>, vector<1x8x256xf32>
    %102 = vector.shape_cast %101 : vector<1x8x256xf32> to vector<8x256xf32>
    %103 = vector.shape_cast %100 : vector<8x256xf32> to vector<1x8x256xf32>
    tpu.vector_store %arg5[%c0_75, %c0_76, %c0_77], %103 {strides = array<i32>} : memref<1x8x256xf32, #tpu.memory_space<vmem>>, vector<1x8x256xf32>,
    %cst_78 = arith.constant dense<0.000000e+00> : vector<8xf32>
    %104 = vector.multi_reduction <add>, %100, %cst_78 [1] : vector<8x256xf32> to vector<8xf32>
    %105 = vector.shape_cast %104 : vector<8xf32> to vector<8x1xf32>
    %c0_79 = arith.constant 0 : index
    %c0_80 = arith.constant 0 : index
    %c0_81 = arith.constant 0 : index
    %106 = vector.load %arg6[%c0_79, %c0_80, %c0_81] : memref<1x8x1xf32, #tpu.memory_space<vmem>>, vector<1x8x1xf32>
    %107 = vector.shape_cast %106 : vector<1x8x1xf32> to vector<8x1xf32>
    %108 = vector.shape_cast %105 : vector<8x1xf32> to vector<1x8x1xf32>
    tpu.vector_store %arg6[%c0_79, %c0_80, %c0_81], %108 {strides = array<i32>} : memref<1x8x1xf32, #tpu.memory_space<vmem>>, vector<1x8x1xf32>,
    %109 = arith.mulf %100, %100 : vector<8x256xf32>
    %cst_82 = arith.constant dense<0.000000e+00> : vector<8xf32>
    %110 = vector.multi_reduction <add>, %109, %cst_82 [1] : vector<8x256xf32> to vector<8xf32>
    %111 = vector.shape_cast %110 : vector<8xf32> to vector<8x1xf32>
    %c0_83 = arith.constant 0 : index
    %c0_84 = arith.constant 0 : index
    %c0_85 = arith.constant 0 : index
    %112 = vector.load %arg7[%c0_83, %c0_84, %c0_85] : memref<1x8x1xf32, #tpu.memory_space<vmem>>, vector<1x8x1xf32>
    %113 = vector.shape_cast %112 : vector<1x8x1xf32> to vector<8x1xf32>
    %114 = vector.shape_cast %111 : vector<8x1xf32> to vector<1x8x1xf32>
    tpu.vector_store %arg7[%c0_83, %c0_84, %c0_85], %114 {strides = array<i32>} : memref<1x8x1xf32, #tpu.memory_space<vmem>>, vector<1x8x1xf32>,
    return
  }
  func.func @transform_0(%arg0: i32) -> (i32, i32, i32) {
    %c0_i32 = arith.constant 0 : i32
    %c0_i32_0 = arith.constant 0 : i32
    %c0_i32_1 = arith.constant 0 : i32
    return %arg0, %c0_i32, %c0_i32_0 : i32, i32, i32
  }
  func.func @transform_1(%arg0: i32) -> (i32, i32, i32, i32) {
    %c0_i32 = arith.constant 0 : i32
    %c0_i32_0 = arith.constant 0 : i32
    %c0_i32_1 = arith.constant 0 : i32
    %c0_i32_2 = arith.constant 0 : i32
    %c0_i32_3 = arith.constant 0 : i32
    return %c0_i32, %c0_i32_0, %c0_i32_1, %c0_i32_2 : i32, i32, i32, i32
  }
  func.func @transform_2(%arg0: i32) -> (i32, i32) {
    %c0_i32 = arith.constant 0 : i32
    %c0_i32_0 = arith.constant 0 : i32
    %c0_i32_1 = arith.constant 0 : i32
    return %c0_i32, %c0_i32_0 : i32, i32
  }
  func.func @transform_3(%arg0: i32) -> (i32, i32) {
    %c0_i32 = arith.constant 0 : i32
    %c0_i32_0 = arith.constant 0 : i32
    %c0_i32_1 = arith.constant 0 : i32
    return %c0_i32, %c0_i32_0 : i32, i32
  }
  func.func @transform_4(%arg0: i32) -> (i32, i32, i32) {
    %c0_i32 = arith.constant 0 : i32
    %c0_i32_0 = arith.constant 0 : i32
    %c0_i32_1 = arith.constant 0 : i32
    return %arg0, %c0_i32, %c0_i32_0 : i32, i32, i32
  }
  func.func @transform_5(%arg0: i32) -> (i32, i32, i32) {
    %c0_i32 = arith.constant 0 : i32
    %c0_i32_0 = arith.constant 0 : i32
    %c0_i32_1 = arith.constant 0 : i32
    return %arg0, %c0_i32, %c0_i32_0 : i32, i32, i32
  }
  func.func @transform_6(%arg0: i32) -> (i32, i32, i32) {
    %c0_i32 = arith.constant 0 : i32
    %c0_i32_0 = arith.constant 0 : i32
    %c0_i32_1 = arith.constant 0 : i32
    return %arg0, %c0_i32, %c0_i32_0 : i32, i32, i32
  }
}

module attributes {stable_mosaic.version = 11 : i64} {
  func.func @_bn_lrelu_kernel(%arg0: i32, %arg1: memref<1x8x256xf32, #tpu.memory_space<vmem>>, %arg2: memref<8x1xf32, #tpu.memory_space<vmem>>, %arg3: memref<8x1xf32, #tpu.memory_space<vmem>>, %arg4: memref<1x8x256xf32, #tpu.memory_space<vmem>>) attributes {dimension_semantics = [#tpu.dimension_semantics<parallel>], iteration_bounds = array<i64: 2>, scalar_prefetch = 0 : i64, scratch_operands = 0 : i64, tpu.core_type = #tpu.core_type<tc>, window_params = [{transform_indices = @transform_0, window_bounds = array<i64: 1, 8, 256>}, {pipeline_mode = #tpu.pipeline_mode<synchronous>, transform_indices = @transform_1, window_bounds = array<i64: 8, 1>}, {pipeline_mode = #tpu.pipeline_mode<synchronous>, transform_indices = @transform_2, window_bounds = array<i64: 8, 1>}, {transform_indices = @transform_3, window_bounds = array<i64: 1, 8, 256>}]} {
    %c0 = arith.constant 0 : index
    %c0_0 = arith.constant 0 : index
    %c0_1 = arith.constant 0 : index
    %0 = vector.load %arg1[%c0, %c0_0, %c0_1] : memref<1x8x256xf32, #tpu.memory_space<vmem>>, vector<1x8x256xf32>
    %1 = vector.shape_cast %0 : vector<1x8x256xf32> to vector<8x256xf32>
    %c0_2 = arith.constant 0 : index
    %c0_3 = arith.constant 0 : index
    %2 = vector.load %arg2[%c0_2, %c0_3] : memref<8x1xf32, #tpu.memory_space<vmem>>, vector<8x1xf32>
    %3 = vector.broadcast %2 : vector<8x1xf32> to vector<8x256xf32>
    %4 = arith.mulf %1, %3 : vector<8x256xf32>
    %c0_4 = arith.constant 0 : index
    %c0_5 = arith.constant 0 : index
    %5 = vector.load %arg3[%c0_4, %c0_5] : memref<8x1xf32, #tpu.memory_space<vmem>>, vector<8x1xf32>
    %6 = vector.broadcast %5 : vector<8x1xf32> to vector<8x256xf32>
    %7 = arith.addf %4, %6 : vector<8x256xf32>
    %cst = arith.constant 0.000000e+00 : f32
    %8 = vector.broadcast %cst : f32 to vector<8x256xf32>
    %9 = arith.cmpf oge, %7, %8 : vector<8x256xf32>
    %cst_6 = arith.constant 0.00999999977 : f32
    %10 = vector.broadcast %cst_6 : f32 to vector<8x256xf32>
    %11 = arith.mulf %10, %7 : vector<8x256xf32>
    %12 = arith.select %9, %7, %11 : vector<8x256xi1>, vector<8x256xf32>
    %c0_7 = arith.constant 0 : index
    %c0_8 = arith.constant 0 : index
    %c0_9 = arith.constant 0 : index
    %13 = vector.load %arg4[%c0_7, %c0_8, %c0_9] : memref<1x8x256xf32, #tpu.memory_space<vmem>>, vector<1x8x256xf32>
    %14 = vector.shape_cast %13 : vector<1x8x256xf32> to vector<8x256xf32>
    %15 = vector.shape_cast %12 : vector<8x256xf32> to vector<1x8x256xf32>
    tpu.vector_store %arg4[%c0_7, %c0_8, %c0_9], %15 {strides = array<i32>} : memref<1x8x256xf32, #tpu.memory_space<vmem>>, vector<1x8x256xf32>,
    return
  }
  func.func @transform_0(%arg0: i32) -> (i32, i32, i32) {
    %c0_i32 = arith.constant 0 : i32
    %c0_i32_0 = arith.constant 0 : i32
    %c0_i32_1 = arith.constant 0 : i32
    return %arg0, %c0_i32, %c0_i32_0 : i32, i32, i32
  }
  func.func @transform_1(%arg0: i32) -> (i32, i32) {
    %c0_i32 = arith.constant 0 : i32
    %c0_i32_0 = arith.constant 0 : i32
    %c0_i32_1 = arith.constant 0 : i32
    return %c0_i32, %c0_i32_0 : i32, i32
  }
  func.func @transform_2(%arg0: i32) -> (i32, i32) {
    %c0_i32 = arith.constant 0 : i32
    %c0_i32_0 = arith.constant 0 : i32
    %c0_i32_1 = arith.constant 0 : i32
    return %c0_i32, %c0_i32_0 : i32, i32
  }
  func.func @transform_3(%arg0: i32) -> (i32, i32, i32) {
    %c0_i32 = arith.constant 0 : i32
    %c0_i32_0 = arith.constant 0 : i32
    %c0_i32_1 = arith.constant 0 : i32
    return %arg0, %c0_i32, %c0_i32_0 : i32, i32, i32
  }
}

</mosaic_0001>

<llo_original>
// kernel: double_conv.3
$region0: #{double_conv.3}
  #allocation0 [shape = 'u32[]', space=smem, size = 0x4, offset = 0x4, fixed_abs, tag = 'smem constant byte address 0x4 - core index']
  #allocation1 [shape = 'u32[72,128]{1,0:T(1,128)}', space=vmem, size = 0x9000, scoped, tag = 'internal scratch']
  #allocation2 [shape = 'f32[4,512]{1,0:T(4,128)}', space=vmem, size = 0x2000, scoped, tag = 'scratch operand']
  %s0 = inlined_call_operand.vmem [shape: f32[2,4,256], index: 0, kind: input, shape index: {}]
  %s1 = inlined_call_operand.vmem [shape: f32[3,3,8,4], index: 1, kind: input, shape index: {}]
  %s2 = inlined_call_operand.vmem [shape: f32[4,1], index: 2, kind: input, shape index: {}]
  %s3 = inlined_call_operand.vmem [shape: f32[4,1], index: 3, kind: input, shape index: {}]
  %s4 = inlined_call_operand.vmem [shape: f32[2,8,256], index: 4, kind: output, shape index: {0}]
  %s5 = inlined_call_operand.vmem [shape: f32[2,8,1], index: 5, kind: output, shape index: {1}]
  %s6 = inlined_call_operand.vmem [shape: f32[2,8,1], index: 6, kind: output, shape index: {2}]
  %7 = xla_tuple %s4, %s5, %s6
  %s8 = sld [smem:[#allocation0]]
  $region65: #{double_conv.3} parent=0
    _
  %s10 = ssub.s32 1, %s8
  %s11 = scalar_select 0, %s10, %s8
  loop: start=0, step=1, limit=4
  $region2: #{double_conv.3} parent=0 // loop_pre_header
    _
  $region3: #{double_conv.3} parent=0 // loop_header
    %s13 = sphi 0, %s17
    %p14 = scmp.ge.s32.totalorder %s13, 4
    %s23 = sphi 0, %s25
    %s26 = sphi 0, %s23
    %s27 = sphi 0, %s26
    %s43 = sphi 0, %s27
    %s47 = sphi 0, %s47
    %s49 = sphi 0, %s47
    %s50 = sphi 0, %s49
    %s64 = sphi 0, %s50
    %s68 = sphi 0, %s68
    %s70 = sphi 0, %s68
    %s71 = sphi 0, %s70
    %s85 = sphi 0, %s71
    %s89 = sphi 0, %s89
    %s91 = sphi 0, %s89
    %s92 = sphi 0, %s91
    %s106 = sphi 0, %s92
    %s112 = sphi 0, %s114
    %s115 = sphi 0, %s112
    %s116 = sphi 0, %s115
    %s132 = sphi 0, %s116
    %s138 = sphi 0, %s140
    %s141 = sphi 0, %s138
    %s142 = sphi 0, %s141
    %s158 = sphi 0, %s142
    %s164 = sphi 0, %s166
    %s167 = sphi 0, %s164
    %s168 = sphi 0, %s167
    %s184 = sphi 0, %s168
  $region4: #{double_conv.3} parent=0 // loop_header_branch
    %16 = sbr.rel (%p14) target = $region8
  $region5: #{double_conv.3} parent=0 // loop_body
    %s18 = ssub.s32 %s13, 1
    %s19 = ssub.s32 %s13, 2
    %s20 = sadd.s32 %s13, 1
    %s21 = ssub.s32 %s13, %s20
    %p22 = scmp.eq.s32.totalorder %s21, 0
    %s24 = sadd.s32 %s23, 1
    %s25 = scalar_select %p22, %s23, %s24
    %p28 = pneg %p22
    %p29 = scmp.eq.s32.totalorder %s13, 1
    %p30 = por %p28, %p29
    %p31 = scmp.ne.s32.totalorder %s23, %s26
    %p32 = scmp.eq.s32.totalorder %s13, 0
    %p33 = por %p31, %p32
    %p34 = scmp.ne.s32.totalorder %s23, %s26
    %p35 = scmp.eq.s32.totalorder %s18, 1
    %p36 = por %p34, %p35
    %p37 = scmp.ne.s32.totalorder %s26, %s27
    %p38 = scmp.eq.s32.totalorder %s18, 0
    %p39 = por %p37, %p38
    %p40 = scmp.ne.s32.totalorder %s26, %s27
    %p41 = scmp.eq.s32.totalorder %s19, 1
    %p42 = por %p40, %p41
    %p44 = scmp.ne.s32.totalorder %s27, %s43
    %p45 = scmp.eq.s32.totalorder %s19, 0
    %p46 = por %p44, %p45
    %s48 = sadd.s32 %s47, 1
    %p51 = scmp.eq.s32.totalorder %s13, 1
    %p52 = scmp.ne.s32.totalorder %s47, %s49
    %p53 = scmp.eq.s32.totalorder %s13, 0
    %p54 = por %p52, %p53
    %p55 = scmp.ne.s32.totalorder %s47, %s49
    %p56 = scmp.eq.s32.totalorder %s18, 1
    %p57 = por %p55, %p56
    %p58 = scmp.ne.s32.totalorder %s49, %s50
    %p59 = scmp.eq.s32.totalorder %s18, 0
    %p60 = por %p58, %p59
    %p61 = scmp.ne.s32.totalorder %s49, %s50
    %p62 = scmp.eq.s32.totalorder %s19, 1
    %p63 = por %p61, %p62
    %p65 = scmp.ne.s32.totalorder %s50, %s64
    %p66 = scmp.eq.s32.totalorder %s19, 0
    %p67 = por %p65, %p66
    %s69 = sadd.s32 %s68, 1
    %p72 = scmp.eq.s32.totalorder %s13, 1
    %p73 = scmp.ne.s32.totalorder %s68, %s70
    %p74 = scmp.eq.s32.totalorder %s13, 0
    %p75 = por %p73, %p74
    %p76 = scmp.ne.s32.totalorder %s68, %s70
    %p77 = scmp.eq.s32.totalorder %s18, 1
    %p78 = por %p76, %p77
    %p79 = scmp.ne.s32.totalorder %s70, %s71
    %p80 = scmp.eq.s32.totalorder %s18, 0
    %p81 = por %p79, %p80
    %p82 = scmp.ne.s32.totalorder %s70, %s71
    %p83 = scmp.eq.s32.totalorder %s19, 1
    %p84 = por %p82, %p83
    %p86 = scmp.ne.s32.totalorder %s71, %s85
    %p87 = scmp.eq.s32.totalorder %s19, 0
    %p88 = por %p86, %p87
    %s90 = sadd.s32 %s89, 1
    %p93 = scmp.eq.s32.totalorder %s13, 1
    %p94 = scmp.ne.s32.totalorder %s89, %s91
    %p95 = scmp.eq.s32.totalorder %s13, 0
    %p96 = por %p94, %p95
    %p97 = scmp.ne.s32.totalorder %s89, %s91
    %p98 = scmp.eq.s32.totalorder %s18, 1
    %p99 = por %p97, %p98
    %p100 = scmp.ne.s32.totalorder %s91, %s92
    %p101 = scmp.eq.s32.totalorder %s18, 0
    %p102 = por %p100, %p101
    %p103 = scmp.ne.s32.totalorder %s91, %s92
    %p104 = scmp.eq.s32.totalorder %s19, 1
    %p105 = por %p103, %p104
    %p107 = scmp.ne.s32.totalorder %s92, %s106
    %p108 = scmp.eq.s32.totalorder %s19, 0
    %p109 = por %p107, %p108
    %s110 = ssub.s32 %s13, %s20
    %p111 = scmp.eq.s32.totalorder %s110, 0
    %s113 = sadd.s32 %s112, 1
    %s114 = scalar_select %p111, %s112, %s113
    %p117 = pneg %p111
    %p118 = scmp.eq.s32.totalorder %s13, 1
    %p119 = por %p117, %p118
    %p120 = scmp.ne.s32.totalorder %s112, %s115
    %p121 = scmp.eq.s32.totalorder %s13, 0
    %p122 = por %p120, %p121
    %p123 = scmp.ne.s32.totalorder %s112, %s115
    %p124 = scmp.eq.s32.totalorder %s18, 1
    %p125 = por %p123, %p124
    %p126 = scmp.ne.s32.totalorder %s115, %s116
    %p127 = scmp.eq.s32.totalorder %s18, 0
    %p128 = por %p126, %p127
    %p129 = scmp.ne.s32.totalorder %s115, %s116
    %p130 = scmp.eq.s32.totalorder %s19, 1
    %p131 = por %p129, %p130
    %p133 = scmp.ne.s32.totalorder %s116, %s132
    %p134 = scmp.eq.s32.totalorder %s19, 0
    %p135 = por %p133, %p134
    %s136 = ssub.s32 %s13, %s20
    %p137 = scmp.eq.s32.totalorder %s136, 0
    %s139 = sadd.s32 %s138, 1
    %s140 = scalar_select %p137, %s138, %s139
    %p143 = pneg %p137
    %p144 = scmp.eq.s32.totalorder %s13, 1
    %p145 = por %p143, %p144
    %p146 = scmp.ne.s32.totalorder %s138, %s141
    %p147 = scmp.eq.s32.totalorder %s13, 0
    %p148 = por %p146, %p147
    %p149 = scmp.ne.s32.totalorder %s138, %s141
    %p150 = scmp.eq.s32.totalorder %s18, 1
    %p151 = por %p149, %p150
    %p152 = scmp.ne.s32.totalorder %s141, %s142
    %p153 = scmp.eq.s32.totalorder %s18, 0
    %p154 = por %p152, %p153
    %p155 = scmp.ne.s32.totalorder %s141, %s142
    %p156 = scmp.eq.s32.totalorder %s19, 1
    %p157 = por %p155, %p156
    %p159 = scmp.ne.s32.totalorder %s142, %s158
    %p160 = scmp.eq.s32.totalorder %s19, 0
    %p161 = por %p159, %p160
    %s162 = ssub.s32 %s13, %s20
    %p163 = scmp.eq.s32.totalorder %s162, 0
    %s165 = sadd.s32 %s164, 1
    %s166 = scalar_select %p163, %s164, %s165
    %p169 = pneg %p163
    %p170 = scmp.eq.s32.totalorder %s13, 1
    %p171 = por %p169, %p170
    %p172 = scmp.ne.s32.totalorder %s164, %s167
    %p173 = scmp.eq.s32.totalorder %s13, 0
    %p174 = por %p172, %p173
    %p175 = scmp.ne.s32.totalorder %s164, %s167
    %p176 = scmp.eq.s32.totalorder %s18, 1
    %p177 = por %p175, %p176
    %p178 = scmp.ne.s32.totalorder %s167, %s168
    %p179 = scmp.eq.s32.totalorder %s18, 0
    %p180 = por %p178, %p179
    %p181 = scmp.ne.s32.totalorder %s167, %s168
    %p182 = scmp.eq.s32.totalorder %s19, 1
    %p183 = por %p181, %p182
    %p185 = scmp.ne.s32.totalorder %s168, %s184
    %p186 = scmp.eq.s32.totalorder %s19, 0
    %p187 = por %p185, %p186
    %p188 = scmp.le.s32.totalorder 1, %s13
    %p189 = scmp.lt.s32.totalorder %s13, 3
    %p190 = pnand %p188, %p189
    %p191 = pneg %p190
    // Predicated region
    $region9: #{double_conv.3} parent=5 // pred_check
      _
    $region10: #{double_conv.3} parent=5 // pred_check_branch
      %193 = sbr.rel (%p190) target = $region12
    $region11: #{double_conv.3} parent=5 // pred_region
      %s194 = ssub.s32 %s13, 1
      // Predicated region
      $region13: #{double_conv.3} parent=11 // pred_check
        %p195 = pneg %p60
      $region14: #{double_conv.3} parent=11 // pred_check_branch
        %197 = sbr.rel (%p195) target = $region16
      $region15: #{double_conv.3} parent=11 // pred_region
        _
      $region16: #{double_conv.3} parent=11 // pred_fallthru
        _
      // Predicated region
      $region17: #{double_conv.3} parent=11 // pred_check
        %p198 = pneg %p81
      $region18: #{double_conv.3} parent=11 // pred_check_branch
        %200 = sbr.rel (%p198) target = $region20
      $region19: #{double_conv.3} parent=11 // pred_region
        _
      $region20: #{double_conv.3} parent=11 // pred_fallthru
        _
      // Predicated region
      $region21: #{double_conv.3} parent=11 // pred_check
        %p201 = pneg %p102
      $region22: #{double_conv.3} parent=11 // pred_check_branch
        %203 = sbr.rel (%p201) target = $region24
      $region23: #{double_conv.3} parent=11 // pred_region
        _
      $region24: #{double_conv.3} parent=11 // pred_fallthru
        _
    $region12: #{double_conv.3} parent=5 // pred_fallthru
      _
    %p204 = scmp.lt.s32.totalorder %s13, 2
    // Predicated region
    $region25: #{double_conv.3} parent=5 // pred_check
      %p205 = pneg %p204
    $region26: #{double_conv.3} parent=5 // pred_check_branch
      %207 = sbr.rel (%p205) target = $region28
    $region27: #{double_conv.3} parent=5 // pred_region
      // Predicated region
      $region29: #{double_conv.3} parent=27 // pred_check
        %p208 = pneg %p33
      $region30: #{double_conv.3} parent=27 // pred_check_branch
        %210 = sbr.rel (%p208) target = $region32
      $region31: #{double_conv.3} parent=27 // pred_region
        %p211 = scmp.lt.s32.totalorder %s13, 1
        %s212 = scalar_select %p211, %s13, 1
        %s213 = smul.addr %s212, 2
        %s214 = smul.addr %s213, 4
        %s215 = scalar_lea.vmem %s0, %s214
      $region32: #{double_conv.3} parent=27 // pred_fallthru
        _
    $region28: #{double_conv.3} parent=5 // pred_fallthru
      _
    %p216 = scmp.le.s32.totalorder 1, %s13
    %p217 = scmp.lt.s32.totalorder %s13, 3
    %p218 = pnand %p216, %p217
    %p219 = pneg %p218
    // Predicated region
    $region33: #{double_conv.3} parent=5 // pred_check
      _
    $region34: #{double_conv.3} parent=5 // pred_check_branch
      %221 = sbr.rel (%p218) target = $region36
    $region35: #{double_conv.3} parent=5 // pred_region
      %s222 = ssub.s32 %s13, 1
      %p223 = scmp.lt.s32.totalorder %s18, 1
      %s224 = scalar_select %p223, %s18, 1
      %s225 = smul.addr %s224, 2
      %s226 = smul.addr %s225, 4
      %s227 = scalar_lea.vmem %s0, %s226
      %p228 = pneg %p39
      %p229 = pneg %p36
      %p230 = pneg %p60
      %p231 = pneg %p57
      %p232 = pneg %p81
      %p233 = pneg %p78
      %p234 = pneg %p102
      %p235 = pneg %p99
      %p236 = pneg %p128
      %p237 = pneg %p125
      %p238 = scmp.lt.s32.totalorder %s18, 1
      %s239 = scalar_select %p238, %s18, 1
      %s240 = smul.addr %s239, 2
      %s241 = smul.addr %s240, 8
      %s242 = scalar_lea.vmem %s4, %s241
      %p243 = pneg %p154
      %p244 = pneg %p151
      %p245 = scmp.lt.s32.totalorder %s18, 1
      %s246 = scalar_select %p245, %s18, 1
      %s247 = smul.addr %s246, 8
      %s248 = scalar_lea.vmem %s5, %s247
      %p249 = pneg %p180
      %p250 = pneg %p177
      %p251 = scmp.lt.s32.totalorder %s18, 1
      %s252 = scalar_select %p251, %s18, 1
      %s253 = smul.addr %s252, 8
      %s254 = scalar_lea.vmem %s6, %s253
      %p255 = scmp.lt.s32.totalorder %s18, 1
      %s256 = scalar_select %p255, %s18, 1
      %s257 = smul.addr %s256, 2
      %s258 = smul.addr %s257, 4
      %s259 = scalar_lea.vmem %s0, %s258
      %p260 = scmp.lt.s32.totalorder %s18, 1
      %s261 = scalar_select %p260, %s18, 1
      %s262 = smul.addr %s261, 2
      %s263 = smul.addr %s262, 8
      %s264 = scalar_lea.vmem %s4, %s263
      %p265 = scmp.lt.s32.totalorder %s18, 1
      %s266 = scalar_select %p265, %s18, 1
      %s267 = smul.addr %s266, 8
      %s268 = scalar_lea.vmem %s5, %s267
      %p269 = scmp.lt.s32.totalorder %s18, 1
      %s270 = scalar_select %p269, %s18, 1
      %s271 = smul.addr %s270, 8
      %s272 = scalar_lea.vmem %s6, %s271
      %v273 = vld [vmem:[%s259] sm:$0xff]
      %274 = vst [vmem:[#allocation2] sm:$0xff] 0.0
      %275 = vst [vmem:[#allocation2 + $0x8] sm:$0xff] 0.0
      %276 = vst [vmem:[#allocation2 + $0x4] sm:$0xff] %v273
      %v277 = vlaneseq
      %v278 = vand.u32 %v277, 127
      %v279 = vadd.s32 %v278, 128
      %v280 = vand.u32 %v278, 15
      %v281 = vand.u32 %v279, 15
      %v282 = vld [vmem:[#allocation2] sm:$0xff]
      %v283 = vld [vmem:[#allocation2 + $0x8] sm:$0xf]
      %vm284 = vcmp.ge.s32.totalorder %v280, 1
      %vm285 = vcmp.ge.s32.totalorder %v281, 1
      %v286 = vsel %vm284, 1, 0
      %v287 = vsel %vm285, 1, 0
      %vm288 = vcmp.eq.s32.totalorder %v286, 1
      %vm289 = vcmp.eq.s32.totalorder %v287, 1
      %292 = vst [vmem:[#allocation1] ss:$2 sm:$0xff] %v282
      %s293 = scalar_lea.vmem [#allocation1], 16
      %294 = vst [vmem:[%s293] ss:$2 sm:$0xff] %v283
      %v295 = vld.sshfl [vmem:[#allocation1] sm:$0xff pattern:$0x75316420]
      %v296 = vld.sshfl [vmem:[#allocation1 + $0x8] sm:$0xff pattern:$0x75316420]
      %v297 = vld.sshfl [vmem:[#allocation1 + $0x10] sm:$0xff pattern:$0x75316420]
      %298 = vrot.lane.b32.xlu0 %v295, 17
      %v299 = vpop.permute.xlu0 %298
      %300 = vrot.lane.b32.xlu0 %v296, 17
      %v301 = vpop.permute.xlu0 %300
      %302 = vrot.lane.b32.xlu0 %v297, 17
      %v303 = vpop.permute.xlu0 %302
      %vm304 = vcmask 138240
      %v305 = vsel %vm304, %v299, %v301
      %v306 = vsel %vm304, %v301, %v303
      %v309 = vsel %vm288, %v305, 0.0
      %v310 = vsel %vm289, %v306, 0.0
      %v311 = vld [vmem:[%s1] sm:$0xff]
      %v312 = vld [vmem:[#allocation2] sm:$0xff]
      %v313 = vld [vmem:[#allocation2 + $0x8] sm:$0xf]
      %s314 = scalar_lea.vmem %s1, 8
      %v315 = vld [vmem:[%s314] sm:$0xff]
      %318 = vst [vmem:[#allocation1] ss:$2 sm:$0xff] %v312
      %s319 = scalar_lea.vmem [#allocation1], 16
      %320 = vst [vmem:[%s319] ss:$2 sm:$0xff] %v313
      %v321 = vld.sshfl [vmem:[#allocation1] sm:$0xff pattern:$0x75316420]
      %v322 = vld.sshfl [vmem:[#allocation1 + $0x8] sm:$0xff pattern:$0x75316420]
      %v323 = vld.sshfl [vmem:[#allocation1 + $0x10] sm:$0xff pattern:$0x75316420]
      %324 = vrot.lane.b32.xlu0 %v321, 16
      %v325 = vpop.permute.xlu0 %324
      %326 = vrot.lane.b32.xlu0 %v322, 16
      %v327 = vpop.permute.xlu0 %326
      %328 = vrot.lane.b32.xlu0 %v323, 16
      %v329 = vpop.permute.xlu0 %328
      %vm330 = vcmask 130048
      %v331 = vsel %vm330, %v325, %v327
      %v332 = vsel %vm330, %v327, %v329
      %vm333 = vcmask 31744
      %v335 = vsel %vm333, %v315, 0
      %vm337 = vcmask 1043456
      %v338 = vsel %vm337, %v331, 0
      %v340 = vsel %vm337, %v332, 0
      %342 = vmatpush.msra.mxu0 0.0
      %343 = vmatpush.msra.mxu0 0.0
      %344 = vmatpush.msra.mxu0 0.0
      %345 = vmatpush.msra.mxu0 0.0
      %346 = vmatpush.msra.mxu0 0.0
      %347 = vmatpush.msra.mxu0 0.0
      %348 = vmatpush.msra.mxu0 0.0
      %349 = vmatpush.msra.mxu0 0.0
      %350 = vmatpush.msra.mxu0 0.0
      %351 = vmatpush.msra.mxu0 0.0
      %352 = vmatpush.msra.mxu0 0.0
      %353 = vmatpush.msra.mxu0 0.0
      %354 = vmatpush.msra.mxu0 0.0
      %355 = vmatpush.msra.mxu0 0.0
      %356 = vmatpush.msra.mxu0 0.0
      %357 = vmatpush.msra.mxu0 %v338
      %358 = vmatmul.f32.gmra.mxu0 %v335
      %v359 = vpop.f32.mrf.mxu0
      %v360 = vadd.f32 0.0, %v359
      %361 = vdwg.mxu0
      %362 = vmatpush.msra.mxu0 0.0
      %363 = vmatpush.msra.mxu0 0.0
      %364 = vmatpush.msra.mxu0 0.0
      %365 = vmatpush.msra.mxu0 0.0
      %366 = vmatpush.msra.mxu0 0.0
      %367 = vmatpush.msra.mxu0 0.0
      %368 = vmatpush.msra.mxu0 0.0
      %369 = vmatpush.msra.mxu0 0.0
      %370 = vmatpush.msra.mxu0 0.0
      %371 = vmatpush.msra.mxu0 0.0
      %372 = vmatpush.msra.mxu0 0.0
      %373 = vmatpush.msra.mxu0 0.0
      %374 = vmatpush.msra.mxu0 0.0
      %375 = vmatpush.msra.mxu0 0.0
      %376 = vmatpush.msra.mxu0 0.0
      %377 = vmatpush.msra.mxu0 %v340
      %378 = vmatmul.f32.gmra.mxu0 %v335
      %v379 = vpop.f32.mrf.mxu0
      %v380 = vadd.f32 0.0, %v379
      %381 = vdwg.mxu0
      %v383 = vsel %vm333, %v311, 0
      %v386 = vsel %vm337, %v309, 0
      %v389 = vsel %vm337, %v310, 0
      %391 = vmatpush.msra.mxu0 0.0
      %392 = vmatpush.msra.mxu0 0.0
      %393 = vmatpush.msra.mxu0 0.0
      %394 = vmatpush.msra.mxu0 0.0
      %395 = vmatpush.msra.mxu0 0.0
      %396 = vmatpush.msra.mxu0 0.0
      %397 = vmatpush.msra.mxu0 0.0
      %398 = vmatpush.msra.mxu0 0.0
      %399 = vmatpush.msra.mxu0 0.0
      %400 = vmatpush.msra.mxu0 0.0
      %401 = vmatpush.msra.mxu0 0.0
      %402 = vmatpush.msra.mxu0 0.0
      %403 = vmatpush.msra.mxu0 0.0
      %404 = vmatpush.msra.mxu0 0.0
      %405 = vmatpush.msra.mxu0 0.0
      %406 = vmatpush.msra.mxu0 %v386
      %407 = vmatmul.f32.gmra.mxu0 %v383
      %v408 = vpop.f32.mrf.mxu0
      %v409 = vadd.f32 %v360, %v408
      %410 = vdwg.mxu0
      %411 = vmatpush.msra.mxu0 0.0
      %412 = vmatpush.msra.mxu0 0.0
      %413 = vmatpush.msra.mxu0 0.0
      %414 = vmatpush.msra.mxu0 0.0
      %415 = vmatpush.msra.mxu0 0.0
      %416 = vmatpush.msra.mxu0 0.0
      %417 = vmatpush.msra.mxu0 0.0
      %418 = vmatpush.msra.mxu0 0.0
      %419 = vmatpush.msra.mxu0 0.0
      %420 = vmatpush.msra.mxu0 0.0
      %421 = vmatpush.msra.mxu0 0.0
      %422 = vmatpush.msra.mxu0 0.0
      %423 = vmatpush.msra.mxu0 0.0
      %424 = vmatpush.msra.mxu0 0.0
      %425 = vmatpush.msra.mxu0 0.0
      %426 = vmatpush.msra.mxu0 %v389
      %427 = vmatmul.f32.gmra.mxu0 %v383
      %v428 = vpop.f32.mrf.mxu0
      %v429 = vadd.f32 %v380, %v428
      %430 = vdwg.mxu0
      %v431 = vld [vmem:[#allocation2] sm:$0xff]
      %v432 = vld [vmem:[#allocation2 + $0x8] sm:$0xf]
      %vm433 = vcmp.le.s32.totalorder %v280, 14
      %vm434 = vcmp.le.s32.totalorder %v281, 14
      %v435 = vsel %vm433, 1, 0
      %v436 = vsel %vm434, 1, 0
      %vm437 = vcmp.eq.s32.totalorder %v435, 1
      %vm438 = vcmp.eq.s32.totalorder %v436, 1
      %441 = vst [vmem:[#allocation1] ss:$2 sm:$0xff] %v431
      %s442 = scalar_lea.vmem [#allocation1], 16
      %443 = vst [vmem:[%s442] ss:$2 sm:$0xff] %v432
      %v444 = vld.sshfl [vmem:[#allocation1] sm:$0xff pattern:$0x75316420]
      %v445 = vld.sshfl [vmem:[#allocation1 + $0x8] sm:$0xff pattern:$0x75316420]
      %v446 = vld.sshfl [vmem:[#allocation1 + $0x10] sm:$0xff pattern:$0x75316420]
      %447 = vrot.lane.b32.xlu0 %v444, 15
      %v448 = vpop.permute.xlu0 %447
      %449 = vrot.lane.b32.xlu0 %v445, 15
      %v450 = vpop.permute.xlu0 %449
      %451 = vrot.lane.b32.xlu0 %v446, 15
      %v452 = vpop.permute.xlu0 %451
      %vm453 = vcmask 121856
      %v454 = vsel %vm453, %v448, %v450
      %v455 = vsel %vm453, %v450, %v452
      %v458 = vsel %vm437, %v454, 0.0
      %v459 = vsel %vm438, %v455, 0.0
      %s460 = scalar_lea.vmem %s1, 16
      %v461 = vld [vmem:[%s460] sm:$0xff]
      %v463 = vsel %vm333, %v461, 0
      %v466 = vsel %vm337, %v458, 0
      %v469 = vsel %vm337, %v459, 0
      %471 = vmatpush.msra.mxu0 0.0
      %472 = vmatpush.msra.mxu0 0.0
      %473 = vmatpush.msra.mxu0 0.0
      %474 = vmatpush.msra.mxu0 0.0
      %475 = vmatpush.msra.mxu0 0.0
      %476 = vmatpush.msra.mxu0 0.0
      %477 = vmatpush.msra.mxu0 0.0
      %478 = vmatpush.msra.mxu0 0.0
      %479 = vmatpush.msra.mxu0 0.0
      %480 = vmatpush.msra.mxu0 0.0
      %481 = vmatpush.msra.mxu0 0.0
      %482 = vmatpush.msra.mxu0 0.0
      %483 = vmatpush.msra.mxu0 0.0
      %484 = vmatpush.msra.mxu0 0.0
      %485 = vmatpush.msra.mxu0 0.0
      %486 = vmatpush.msra.mxu0 %v466
      %487 = vmatmul.f32.gmra.mxu0 %v463
      %v488 = vpop.f32.mrf.mxu0
      %v489 = vadd.f32 0.0, %v488
      %490 = vdwg.mxu0
      %491 = vmatpush.msra.mxu0 0.0
      %492 = vmatpush.msra.mxu0 0.0
      %493 = vmatpush.msra.mxu0 0.0
      %494 = vmatpush.msra.mxu0 0.0
      %495 = vmatpush.msra.mxu0 0.0
      %496 = vmatpush.msra.mxu0 0.0
      %497 = vmatpush.msra.mxu0 0.0
      %498 = vmatpush.msra.mxu0 0.0
      %499 = vmatpush.msra.mxu0 0.0
      %500 = vmatpush.msra.mxu0 0.0
      %501 = vmatpush.msra.mxu0 0.0
      %502 = vmatpush.msra.mxu0 0.0
      %503 = vmatpush.msra.mxu0 0.0
      %504 = vmatpush.msra.mxu0 0.0
      %505 = vmatpush.msra.mxu0 0.0
      %506 = vmatpush.msra.mxu0 %v469
      %507 = vmatmul.f32.gmra.mxu0 %v463
      %v508 = vpop.f32.mrf.mxu0
      %v509 = vadd.f32 0.0, %v508
      %510 = vdwg.mxu0
      %v511 = vadd.f32 %v409, %v489
      %v512 = vadd.f32 %v429, %v509
      %v513 = vld [vmem:[#allocation2] sm:$0xff]
      %v514 = vld [vmem:[#allocation2 + $0x8] sm:$0xf]
      %517 = vst [vmem:[#allocation1] ss:$2 sm:$0xff] %v513
      %s518 = scalar_lea.vmem [#allocation1], 16
      %519 = vst [vmem:[%s518] ss:$2 sm:$0xff] %v514
      %v520 = vld.sshfl [vmem:[#allocation1] sm:$0xff pattern:$0x75316420]
      %v521 = vld.sshfl [vmem:[#allocation1 + $0x8] sm:$0xff pattern:$0x75316420]
      %v522 = vld.sshfl [vmem:[#allocation1 + $0x10] sm:$0xff pattern:$0x75316420]
      %523 = vrot.lane.b32.xlu0 %v520, 1
      %v524 = vpop.permute.xlu0 %523
      %525 = vrot.lane.b32.xlu0 %v521, 1
      %v526 = vpop.permute.xlu0 %525
      %527 = vrot.lane.b32.xlu0 %v522, 1
      %v528 = vpop.permute.xlu0 %527
      %vm529 = vcmask 7168
      %v530 = vsel %vm529, %v524, %v526
      %v531 = vsel %vm529, %v526, %v528
      %v534 = vsel %vm288, %v530, 0.0
      %v535 = vsel %vm289, %v531, 0.0
      %s536 = scalar_lea.vmem %s1, 24
      %v537 = vld [vmem:[%s536] sm:$0xff]
      %v539 = vsel %vm333, %v537, 0
      %v542 = vsel %vm337, %v534, 0
      %v545 = vsel %vm337, %v535, 0
      %547 = vmatpush.msra.mxu0 0.0
      %548 = vmatpush.msra.mxu0 0.0
      %549 = vmatpush.msra.mxu0 0.0
      %550 = vmatpush.msra.mxu0 0.0
      %551 = vmatpush.msra.mxu0 0.0
      %552 = vmatpush.msra.mxu0 0.0
      %553 = vmatpush.msra.mxu0 0.0
      %554 = vmatpush.msra.mxu0 0.0
      %555 = vmatpush.msra.mxu0 0.0
      %556 = vmatpush.msra.mxu0 0.0
      %557 = vmatpush.msra.mxu0 0.0
      %558 = vmatpush.msra.mxu0 0.0
      %559 = vmatpush.msra.mxu0 0.0
      %560 = vmatpush.msra.mxu0 0.0
      %561 = vmatpush.msra.mxu0 0.0
      %562 = vmatpush.msra.mxu0 %v542
      %563 = vmatmul.f32.gmra.mxu0 %v539
      %v564 = vpop.f32.mrf.mxu0
      %v565 = vadd.f32 0.0, %v564
      %566 = vdwg.mxu0
      %567 = vmatpush.msra.mxu0 0.0
      %568 = vmatpush.msra.mxu0 0.0
      %569 = vmatpush.msra.mxu0 0.0
      %570 = vmatpush.msra.mxu0 0.0
      %571 = vmatpush.msra.mxu0 0.0
      %572 = vmatpush.msra.mxu0 0.0
      %573 = vmatpush.msra.mxu0 0.0
      %574 = vmatpush.msra.mxu0 0.0
      %575 = vmatpush.msra.mxu0 0.0
      %576 = vmatpush.msra.mxu0 0.0
      %577 = vmatpush.msra.mxu0 0.0
      %578 = vmatpush.msra.mxu0 0.0
      %579 = vmatpush.msra.mxu0 0.0
      %580 = vmatpush.msra.mxu0 0.0
      %581 = vmatpush.msra.mxu0 0.0
      %582 = vmatpush.msra.mxu0 %v545
      %583 = vmatmul.f32.gmra.mxu0 %v539
      %v584 = vpop.f32.mrf.mxu0
      %v585 = vadd.f32 0.0, %v584
      %586 = vdwg.mxu0
      %v587 = vadd.f32 %v511, %v565
      %v588 = vadd.f32 %v512, %v585
      %v589 = vld [vmem:[#allocation2 + $0x4] sm:$0xff]
      %s590 = scalar_lea.vmem %s1, 32
      %v591 = vld [vmem:[%s590] sm:$0xff]
      %593 = vst [vmem:[#allocation1] ss:$2 sm:$0xff] %v589
      %v594 = vld.sshfl [vmem:[#allocation1] sm:$0xff pattern:$0x75316420]
      %v595 = vld.sshfl [vmem:[#allocation1 + $0x8] sm:$0xff pattern:$0x75316420]
      %v597 = vsel %vm333, %v591, 0
      %v599 = vsel %vm337, %v594, 0
      %v601 = vsel %vm337, %v595, 0
      %603 = vmatpush.msra.mxu0 0.0
      %604 = vmatpush.msra.mxu0 0.0
      %605 = vmatpush.msra.mxu0 0.0
      %606 = vmatpush.msra.mxu0 0.0
      %607 = vmatpush.msra.mxu0 0.0
      %608 = vmatpush.msra.mxu0 0.0
      %609 = vmatpush.msra.mxu0 0.0
      %610 = vmatpush.msra.mxu0 0.0
      %611 = vmatpush.msra.mxu0 0.0
      %612 = vmatpush.msra.mxu0 0.0
      %613 = vmatpush.msra.mxu0 0.0
      %614 = vmatpush.msra.mxu0 0.0
      %615 = vmatpush.msra.mxu0 0.0
      %616 = vmatpush.msra.mxu0 0.0
      %617 = vmatpush.msra.mxu0 0.0
      %618 = vmatpush.msra.mxu0 %v599
      %619 = vmatmul.f32.gmra.mxu0 %v597
      %v620 = vpop.f32.mrf.mxu0
      %v621 = vadd.f32 0.0, %v620
      %622 = vdwg.mxu0
      %623 = vmatpush.msra.mxu0 0.0
      %624 = vmatpush.msra.mxu0 0.0
      %625 = vmatpush.msra.mxu0 0.0
      %626 = vmatpush.msra.mxu0 0.0
      %627 = vmatpush.msra.mxu0 0.0
      %628 = vmatpush.msra.mxu0 0.0
      %629 = vmatpush.msra.mxu0 0.0
      %630 = vmatpush.msra.mxu0 0.0
      %631 = vmatpush.msra.mxu0 0.0
      %632 = vmatpush.msra.mxu0 0.0
      %633 = vmatpush.msra.mxu0 0.0
      %634 = vmatpush.msra.mxu0 0.0
      %635 = vmatpush.msra.mxu0 0.0
      %636 = vmatpush.msra.mxu0 0.0
      %637 = vmatpush.msra.mxu0 0.0
      %638 = vmatpush.msra.mxu0 %v601
      %639 = vmatmul.f32.gmra.mxu0 %v597
      %v640 = vpop.f32.mrf.mxu0
      %v641 = vadd.f32 0.0, %v640
      %642 = vdwg.mxu0
      %v643 = vadd.f32 %v587, %v621
      %v644 = vadd.f32 %v588, %v641
      %v645 = vld [vmem:[#allocation2 + $0x4] sm:$0xff]
      %v646 = vld [vmem:[#allocation2 + $0xc] sm:$0xf]
      %649 = vst [vmem:[#allocation1] ss:$2 sm:$0xff] %v645
      %s650 = scalar_lea.vmem [#allocation1], 16
      %651 = vst [vmem:[%s650] ss:$2 sm:$0xff] %v646
      %v652 = vld.sshfl [vmem:[#allocation1] sm:$0xff pattern:$0x75316420]
      %v653 = vld.sshfl [vmem:[#allocation1 + $0x8] sm:$0xff pattern:$0x75316420]
      %v654 = vld.sshfl [vmem:[#allocation1 + $0x10] sm:$0xff pattern:$0x75316420]
      %655 = vrot.lane.b32.xlu0 %v652, 127
      %v656 = vpop.permute.xlu0 %655
      %657 = vrot.lane.b32.xlu0 %v653, 127
      %v658 = vpop.permute.xlu0 %657
      %659 = vrot.lane.b32.xlu0 %v654, 127
      %v660 = vpop.permute.xlu0 %659
      %vm661 = vcmask 1039360
      %v662 = vsel %vm661, %v656, %v658
      %v663 = vsel %vm661, %v658, %v660
      %v666 = vsel %vm437, %v662, 0.0
      %v667 = vsel %vm438, %v663, 0.0
      %s668 = scalar_lea.vmem %s1, 40
      %v669 = vld [vmem:[%s668] sm:$0xff]
      %v671 = vsel %vm333, %v669, 0
      %v674 = vsel %vm337, %v666, 0
      %v677 = vsel %vm337, %v667, 0
      %679 = vmatpush.msra.mxu0 0.0
      %680 = vmatpush.msra.mxu0 0.0
      %681 = vmatpush.msra.mxu0 0.0
      %682 = vmatpush.msra.mxu0 0.0
      %683 = vmatpush.msra.mxu0 0.0
      %684 = vmatpush.msra.mxu0 0.0
      %685 = vmatpush.msra.mxu0 0.0
      %686 = vmatpush.msra.mxu0 0.0
      %687 = vmatpush.msra.mxu0 0.0
      %688 = vmatpush.msra.mxu0 0.0
      %689 = vmatpush.msra.mxu0 0.0
      %690 = vmatpush.msra.mxu0 0.0
      %691 = vmatpush.msra.mxu0 0.0
      %692 = vmatpush.msra.mxu0 0.0
      %693 = vmatpush.msra.mxu0 0.0
      %694 = vmatpush.msra.mxu0 %v674
      %695 = vmatmul.f32.gmra.mxu0 %v671
      %v696 = vpop.f32.mrf.mxu0
      %v697 = vadd.f32 0.0, %v696
      %698 = vdwg.mxu0
      %699 = vmatpush.msra.mxu0 0.0
      %700 = vmatpush.msra.mxu0 0.0
      %701 = vmatpush.msra.mxu0 0.0
      %702 = vmatpush.msra.mxu0 0.0
      %703 = vmatpush.msra.mxu0 0.0
      %704 = vmatpush.msra.mxu0 0.0
      %705 = vmatpush.msra.mxu0 0.0
      %706 = vmatpush.msra.mxu0 0.0
      %707 = vmatpush.msra.mxu0 0.0
      %708 = vmatpush.msra.mxu0 0.0
      %709 = vmatpush.msra.mxu0 0.0
      %710 = vmatpush.msra.mxu0 0.0
      %711 = vmatpush.msra.mxu0 0.0
      %712 = vmatpush.msra.mxu0 0.0
      %713 = vmatpush.msra.mxu0 0.0
      %714 = vmatpush.msra.mxu0 %v677
      %715 = vmatmul.f32.gmra.mxu0 %v671
      %v716 = vpop.f32.mrf.mxu0
      %v717 = vadd.f32 0.0, %v716
      %718 = vdwg.mxu0
      %v719 = vadd.f32 %v643, %v697
      %v720 = vadd.f32 %v644, %v717
      %v721 = vld [vmem:[#allocation2 + $0x4] sm:$0xff]
      %v722 = vld [vmem:[#allocation2 + $0xc] sm:$0xf]
      %725 = vst [vmem:[#allocation1] ss:$2 sm:$0xff] %v721
      %s726 = scalar_lea.vmem [#allocation1], 16
      %727 = vst [vmem:[%s726] ss:$2 sm:$0xff] %v722
      %v728 = vld.sshfl [vmem:[#allocation1] sm:$0xff pattern:$0x75316420]
      %v729 = vld.sshfl [vmem:[#allocation1 + $0x8] sm:$0xff pattern:$0x75316420]
      %v730 = vld.sshfl [vmem:[#allocation1 + $0x10] sm:$0xff pattern:$0x75316420]
      %731 = vrot.lane.b32.xlu0 %v728, 113
      %v732 = vpop.permute.xlu0 %731
      %733 = vrot.lane.b32.xlu0 %v729, 113
      %v734 = vpop.permute.xlu0 %733
      %735 = vrot.lane.b32.xlu0 %v730, 113
      %v736 = vpop.permute.xlu0 %735
      %vm737 = vcmask 924672
      %v738 = vsel %vm737, %v732, %v734
      %v739 = vsel %vm737, %v734, %v736
      %v742 = vsel %vm288, %v738, 0.0
      %v743 = vsel %vm289, %v739, 0.0
      %s744 = scalar_lea.vmem %s1, 48
      %v745 = vld [vmem:[%s744] sm:$0xff]
      %v747 = vsel %vm333, %v745, 0
      %v750 = vsel %vm337, %v742, 0
      %v753 = vsel %vm337, %v743, 0
      %755 = vmatpush.msra.mxu0 0.0
      %756 = vmatpush.msra.mxu0 0.0
      %757 = vmatpush.msra.mxu0 0.0
      %758 = vmatpush.msra.mxu0 0.0
      %759 = vmatpush.msra.mxu0 0.0
      %760 = vmatpush.msra.mxu0 0.0
      %761 = vmatpush.msra.mxu0 0.0
      %762 = vmatpush.msra.mxu0 0.0
      %763 = vmatpush.msra.mxu0 0.0
      %764 = vmatpush.msra.mxu0 0.0
      %765 = vmatpush.msra.mxu0 0.0
      %766 = vmatpush.msra.mxu0 0.0
      %767 = vmatpush.msra.mxu0 0.0
      %768 = vmatpush.msra.mxu0 0.0
      %769 = vmatpush.msra.mxu0 0.0
      %770 = vmatpush.msra.mxu0 %v750
      %771 = vmatmul.f32.gmra.mxu0 %v747
      %v772 = vpop.f32.mrf.mxu0
      %v773 = vadd.f32 0.0, %v772
      %774 = vdwg.mxu0
      %775 = vmatpush.msra.mxu0 0.0
      %776 = vmatpush.msra.mxu0 0.0
      %777 = vmatpush.msra.mxu0 0.0
      %778 = vmatpush.msra.mxu0 0.0
      %779 = vmatpush.msra.mxu0 0.0
      %780 = vmatpush.msra.mxu0 0.0
      %781 = vmatpush.msra.mxu0 0.0
      %782 = vmatpush.msra.mxu0 0.0
      %783 = vmatpush.msra.mxu0 0.0
      %784 = vmatpush.msra.mxu0 0.0
      %785 = vmatpush.msra.mxu0 0.0
      %786 = vmatpush.msra.mxu0 0.0
      %787 = vmatpush.msra.mxu0 0.0
      %788 = vmatpush.msra.mxu0 0.0
      %789 = vmatpush.msra.mxu0 0.0
      %790 = vmatpush.msra.mxu0 %v753
      %791 = vmatmul.f32.gmra.mxu0 %v747
      %v792 = vpop.f32.mrf.mxu0
      %v793 = vadd.f32 0.0, %v792
      %794 = vdwg.mxu0
      %v795 = vadd.f32 %v719, %v773
      %v796 = vadd.f32 %v720, %v793
      %v797 = vld [vmem:[#allocation2 + $0x4] sm:$0xff]
      %v798 = vld [vmem:[#allocation2 + $0xc] sm:$0xf]
      %s799 = scalar_lea.vmem %s1, 56
      %v800 = vld [vmem:[%s799] sm:$0xff]
      %803 = vst [vmem:[#allocation1] ss:$2 sm:$0xff] %v797
      %s804 = scalar_lea.vmem [#allocation1], 16
      %805 = vst [vmem:[%s804] ss:$2 sm:$0xff] %v798
      %v806 = vld.sshfl [vmem:[#allocation1] sm:$0xff pattern:$0x75316420]
      %v807 = vld.sshfl [vmem:[#allocation1 + $0x8] sm:$0xff pattern:$0x75316420]
      %v808 = vld.sshfl [vmem:[#allocation1 + $0x10] sm:$0xff pattern:$0x75316420]
      %809 = vrot.lane.b32.xlu0 %v806, 112
      %v810 = vpop.permute.xlu0 %809
      %811 = vrot.lane.b32.xlu0 %v807, 112
      %v812 = vpop.permute.xlu0 %811
      %813 = vrot.lane.b32.xlu0 %v808, 112
      %v814 = vpop.permute.xlu0 %813
      %vm815 = vcmask 916480
      %v816 = vsel %vm815, %v810, %v812
      %v817 = vsel %vm815, %v812, %v814
      %v819 = vsel %vm333, %v800, 0
      %v821 = vsel %vm337, %v816, 0
      %v823 = vsel %vm337, %v817, 0
      %825 = vmatpush.msra.mxu0 0.0
      %826 = vmatpush.msra.mxu0 0.0
      %827 = vmatpush.msra.mxu0 0.0
      %828 = vmatpush.msra.mxu0 0.0
      %829 = vmatpush.msra.mxu0 0.0
      %830 = vmatpush.msra.mxu0 0.0
      %831 = vmatpush.msra.mxu0 0.0
      %832 = vmatpush.msra.mxu0 0.0
      %833 = vmatpush.msra.mxu0 0.0
      %834 = vmatpush.msra.mxu0 0.0
      %835 = vmatpush.msra.mxu0 0.0
      %836 = vmatpush.msra.mxu0 0.0
      %837 = vmatpush.msra.mxu0 0.0
      %838 = vmatpush.msra.mxu0 0.0
      %839 = vmatpush.msra.mxu0 0.0
      %840 = vmatpush.msra.mxu0 %v821
      %841 = vmatmul.f32.gmra.mxu0 %v819
      %v842 = vpop.f32.mrf.mxu0
      %v843 = vadd.f32 0.0, %v842
      %844 = vdwg.mxu0
      %845 = vmatpush.msra.mxu0 0.0
      %846 = vmatpush.msra.mxu0 0.0
      %847 = vmatpush.msra.mxu0 0.0
      %848 = vmatpush.msra.mxu0 0.0
      %849 = vmatpush.msra.mxu0 0.0
      %850 = vmatpush.msra.mxu0 0.0
      %851 = vmatpush.msra.mxu0 0.0
      %852 = vmatpush.msra.mxu0 0.0
      %853 = vmatpush.msra.mxu0 0.0
      %854 = vmatpush.msra.mxu0 0.0
      %855 = vmatpush.msra.mxu0 0.0
      %856 = vmatpush.msra.mxu0 0.0
      %857 = vmatpush.msra.mxu0 0.0
      %858 = vmatpush.msra.mxu0 0.0
      %859 = vmatpush.msra.mxu0 0.0
      %860 = vmatpush.msra.mxu0 %v823
      %861 = vmatmul.f32.gmra.mxu0 %v819
      %v862 = vpop.f32.mrf.mxu0
      %v863 = vadd.f32 0.0, %v862
      %864 = vdwg.mxu0
      %v865 = vadd.f32 %v795, %v843
      %v866 = vadd.f32 %v796, %v863
      %v867 = vld [vmem:[#allocation2 + $0x4] sm:$0xff]
      %v868 = vld [vmem:[#allocation2 + $0xc] sm:$0xf]
      %871 = vst [vmem:[#allocation1] ss:$2 sm:$0xff] %v867
      %s872 = scalar_lea.vmem [#allocation1], 16
      %873 = vst [vmem:[%s872] ss:$2 sm:$0xff] %v868
      %v874 = vld.sshfl [vmem:[#allocation1] sm:$0xff pattern:$0x75316420]
      %v875 = vld.sshfl [vmem:[#allocation1 + $0x8] sm:$0xff pattern:$0x75316420]
      %v876 = vld.sshfl [vmem:[#allocation1 + $0x10] sm:$0xff pattern:$0x75316420]
      %877 = vrot.lane.b32.xlu0 %v874, 111
      %v878 = vpop.permute.xlu0 %877
      %879 = vrot.lane.b32.xlu0 %v875, 111
      %v880 = vpop.permute.xlu0 %879
      %881 = vrot.lane.b32.xlu0 %v876, 111
      %v882 = vpop.permute.xlu0 %881
      %vm883 = vcmask 908288
      %v884 = vsel %vm883, %v878, %v880
      %v885 = vsel %vm883, %v880, %v882
      %v888 = vsel %vm437, %v884, 0.0
      %v889 = vsel %vm438, %v885, 0.0
      %s890 = scalar_lea.vmem %s1, 64
      %v891 = vld [vmem:[%s890] sm:$0xff]
      %v893 = vsel %vm333, %v891, 0
      %v896 = vsel %vm337, %v888, 0
      %v899 = vsel %vm337, %v889, 0
      %901 = vmatpush.msra.mxu0 0.0
      %902 = vmatpush.msra.mxu0 0.0
      %903 = vmatpush.msra.mxu0 0.0
      %904 = vmatpush.msra.mxu0 0.0
      %905 = vmatpush.msra.mxu0 0.0
      %906 = vmatpush.msra.mxu0 0.0
      %907 = vmatpush.msra.mxu0 0.0
      %908 = vmatpush.msra.mxu0 0.0
      %909 = vmatpush.msra.mxu0 0.0
      %910 = vmatpush.msra.mxu0 0.0
      %911 = vmatpush.msra.mxu0 0.0
      %912 = vmatpush.msra.mxu0 0.0
      %913 = vmatpush.msra.mxu0 0.0
      %914 = vmatpush.msra.mxu0 0.0
      %915 = vmatpush.msra.mxu0 0.0
      %916 = vmatpush.msra.mxu0 %v896
      %917 = vmatmul.f32.gmra.mxu0 %v893
      %v918 = vpop.f32.mrf.mxu0
      %v919 = vadd.f32 0.0, %v918
      %920 = vdwg.mxu0
      %921 = vmatpush.msra.mxu0 0.0
      %922 = vmatpush.msra.mxu0 0.0
      %923 = vmatpush.msra.mxu0 0.0
      %924 = vmatpush.msra.mxu0 0.0
      %925 = vmatpush.msra.mxu0 0.0
      %926 = vmatpush.msra.mxu0 0.0
      %927 = vmatpush.msra.mxu0 0.0
      %928 = vmatpush.msra.mxu0 0.0
      %929 = vmatpush.msra.mxu0 0.0
      %930 = vmatpush.msra.mxu0 0.0
      %931 = vmatpush.msra.mxu0 0.0
      %932 = vmatpush.msra.mxu0 0.0
      %933 = vmatpush.msra.mxu0 0.0
      %934 = vmatpush.msra.mxu0 0.0
      %935 = vmatpush.msra.mxu0 0.0
      %936 = vmatpush.msra.mxu0 %v899
      %937 = vmatmul.f32.gmra.mxu0 %v893
      %v938 = vpop.f32.mrf.mxu0
      %v939 = vadd.f32 0.0, %v938
      %940 = vdwg.mxu0
      %v941 = vadd.f32 %v865, %v919
      %v942 = vadd.f32 %v866, %v939
      %943 = vst [vmem:[%s264] sm:$0xff] %v941
      %944 = vst [vmem:[%s264 + $0x8] sm:$0xff] %v942
      %v945 = vadd.f32 %v941, %v942
      %946 = vadd.xlane.f32.xlu0 %v945
      %v947 = vpop.xlane.xlu0 %946
      %948 = vst.msk [vmem:[%s268] sm:$0xff] %vm529, %v947
      %v949 = vmul.f32 %v941, %v941
      %v950 = vmul.f32 %v942, %v942
      %v951 = vadd.f32 %v949, %v950
      %952 = vadd.xlane.f32.xlu0 %v951
      %v953 = vpop.xlane.xlu0 %952
      %954 = vst.msk [vmem:[%s272] sm:$0xff] %vm529, %v953
      %p955 = scmp.lt.s32.totalorder %s18, 1
      %s956 = scalar_select %p955, %s18, 1
      %s957 = smul.addr %s956, 2
      %s958 = smul.addr %s957, 8
      %s959 = scalar_lea.vmem %s4, %s958
      %p960 = scmp.lt.s32.totalorder %s18, 1
      %s961 = scalar_select %p960, %s18, 1
      %s962 = smul.addr %s961, 8
      %s963 = scalar_lea.vmem %s5, %s962
      %p964 = scmp.lt.s32.totalorder %s18, 1
      %s965 = scalar_select %p964, %s18, 1
      %s966 = smul.addr %s965, 8
      %s967 = scalar_lea.vmem %s6, %s966
      // Predicated region
      $region37: #{double_conv.3} parent=35 // pred_check
        %p968 = pneg %p125
      $region38: #{double_conv.3} parent=35 // pred_check_branch
        %970 = sbr.rel (%p968) target = $region40
      $region39: #{double_conv.3} parent=35 // pred_region
        _
      $region40: #{double_conv.3} parent=35 // pred_fallthru
        _
      // Predicated region
      $region41: #{double_conv.3} parent=35 // pred_check
        %p971 = pneg %p151
      $region42: #{double_conv.3} parent=35 // pred_check_branch
        %973 = sbr.rel (%p971) target = $region44
      $region43: #{double_conv.3} parent=35 // pred_region
        _
      $region44: #{double_conv.3} parent=35 // pred_fallthru
        _
      // Predicated region
      $region45: #{double_conv.3} parent=35 // pred_check
        %p974 = pneg %p177
      $region46: #{double_conv.3} parent=35 // pred_check_branch
        %976 = sbr.rel (%p974) target = $region48
      $region47: #{double_conv.3} parent=35 // pred_region
        _
      $region48: #{double_conv.3} parent=35 // pred_fallthru
        _
    $region36: #{double_conv.3} parent=5 // pred_fallthru
      _
    %p977 = scmp.le.s32.totalorder 2, %s13
    // Predicated region
    $region49: #{double_conv.3} parent=5 // pred_check
      %p978 = pneg %p977
    $region50: #{double_conv.3} parent=5 // pred_check_branch
      %980 = sbr.rel (%p978) target = $region52
    $region51: #{double_conv.3} parent=5 // pred_region
      %s981 = ssub.s32 %s13, 2
      // Predicated region
      $region53: #{double_conv.3} parent=51 // pred_check
        %p982 = pneg %p131
      $region54: #{double_conv.3} parent=51 // pred_check_branch
        %984 = sbr.rel (%p982) target = $region56
      $region55: #{double_conv.3} parent=51 // pred_region
        %p985 = scmp.lt.s32.totalorder %s19, 1
        %s986 = scalar_select %p985, %s19, 1
        %s987 = smul.addr %s986, 2
        %s988 = smul.addr %s987, 8
        %s989 = scalar_lea.vmem %s4, %s988
      $region56: #{double_conv.3} parent=51 // pred_fallthru
        _
      // Predicated region
      $region57: #{double_conv.3} parent=51 // pred_check
        %p990 = pneg %p157
      $region58: #{double_conv.3} parent=51 // pred_check_branch
        %992 = sbr.rel (%p990) target = $region60
      $region59: #{double_conv.3} parent=51 // pred_region
        %p993 = scmp.lt.s32.totalorder %s19, 1
        %s994 = scalar_select %p993, %s19, 1
        %s995 = smul.addr %s994, 8
        %s996 = scalar_lea.vmem %s5, %s995
      $region60: #{double_conv.3} parent=51 // pred_fallthru
        _
      // Predicated region
      $region61: #{double_conv.3} parent=51 // pred_check
        %p997 = pneg %p183
      $region62: #{double_conv.3} parent=51 // pred_check_branch
        %999 = sbr.rel (%p997) target = $region64
      $region63: #{double_conv.3} parent=51 // pred_region
        %p1000 = scmp.lt.s32.totalorder %s19, 1
        %s1001 = scalar_select %p1000, %s19, 1
        %s1002 = smul.addr %s1001, 8
        %s1003 = scalar_lea.vmem %s6, %s1002
      $region64: #{double_conv.3} parent=51 // pred_fallthru
        _
    $region52: #{double_conv.3} parent=5 // pred_fallthru
      _
  $region6: #{double_conv.3} parent=0 // loop_footer
    %s17 = sadd.s32 1, %s13
  $region7: #{double_conv.3} parent=0 // loop_footer_branch
    %12 = sbr.rel target = $region3
  $region8: #{double_conv.3} parent=0 // loop_exit
    _

// kernel: double_conv.5
$region0: #{double_conv.5}
  #allocation0 [shape = 'u32[]', space=smem, size = 0x4, offset = 0x4, fixed_abs, tag = 'smem constant byte address 0x4 - core index']
  #allocation1 [shape = 'u32[72,128]{1,0:T(1,128)}', space=vmem, size = 0x9000, scoped, tag = 'internal scratch']
  %s0 = inlined_call_operand.vmem [shape: f32[2,8,256], index: 0, kind: input, shape index: {}]
  %s1 = inlined_call_operand.vmem [shape: f32[8,1], index: 1, kind: input, shape index: {}]
  %s2 = inlined_call_operand.vmem [shape: f32[8,1], index: 2, kind: input, shape index: {}]
  %s3 = inlined_call_operand.vmem [shape: f32[2,8,256], index: 3, kind: output, shape index: {}]
  %s4 = sld [smem:[#allocation0]]
  $region45: #{double_conv.5} parent=0
    _
  %s6 = ssub.s32 1, %s4
  %s7 = scalar_select 0, %s6, %s4
  loop: start=0, step=1, limit=4
  $region2: #{double_conv.5} parent=0 // loop_pre_header
    _
  $region3: #{double_conv.5} parent=0 // loop_header
    %s9 = sphi 0, %s13
    %p10 = scmp.ge.s32.totalorder %s9, 4
    %s19 = sphi 0, %s21
    %s22 = sphi 0, %s19
    %s23 = sphi 0, %s22
    %s39 = sphi 0, %s23
    %s43 = sphi 0, %s43
    %s45 = sphi 0, %s43
    %s46 = sphi 0, %s45
    %s60 = sphi 0, %s46
    %s64 = sphi 0, %s64
    %s66 = sphi 0, %s64
    %s67 = sphi 0, %s66
    %s81 = sphi 0, %s67
    %s87 = sphi 0, %s89
    %s90 = sphi 0, %s87
    %s91 = sphi 0, %s90
    %s107 = sphi 0, %s91
  $region4: #{double_conv.5} parent=0 // loop_header_branch
    %12 = sbr.rel (%p10) target = $region8
  $region5: #{double_conv.5} parent=0 // loop_body
    %s14 = ssub.s32 %s9, 1
    %s15 = ssub.s32 %s9, 2
    %s16 = sadd.s32 %s9, 1
    %s17 = ssub.s32 %s9, %s16
    %p18 = scmp.eq.s32.totalorder %s17, 0
    %s20 = sadd.s32 %s19, 1
    %s21 = scalar_select %p18, %s19, %s20
    %p24 = pneg %p18
    %p25 = scmp.eq.s32.totalorder %s9, 1
    %p26 = por %p24, %p25
    %p27 = scmp.ne.s32.totalorder %s19, %s22
    %p28 = scmp.eq.s32.totalorder %s9, 0
    %p29 = por %p27, %p28
    %p30 = scmp.ne.s32.totalorder %s19, %s22
    %p31 = scmp.eq.s32.totalorder %s14, 1
    %p32 = por %p30, %p31
    %p33 = scmp.ne.s32.totalorder %s22, %s23
    %p34 = scmp.eq.s32.totalorder %s14, 0
    %p35 = por %p33, %p34
    %p36 = scmp.ne.s32.totalorder %s22, %s23
    %p37 = scmp.eq.s32.totalorder %s15, 1
    %p38 = por %p36, %p37
    %p40 = scmp.ne.s32.totalorder %s23, %s39
    %p41 = scmp.eq.s32.totalorder %s15, 0
    %p42 = por %p40, %p41
    %s44 = sadd.s32 %s43, 1
    %p47 = scmp.eq.s32.totalorder %s9, 1
    %p48 = scmp.ne.s32.totalorder %s43, %s45
    %p49 = scmp.eq.s32.totalorder %s9, 0
    %p50 = por %p48, %p49
    %p51 = scmp.ne.s32.totalorder %s43, %s45
    %p52 = scmp.eq.s32.totalorder %s14, 1
    %p53 = por %p51, %p52
    %p54 = scmp.ne.s32.totalorder %s45, %s46
    %p55 = scmp.eq.s32.totalorder %s14, 0
    %p56 = por %p54, %p55
    %p57 = scmp.ne.s32.totalorder %s45, %s46
    %p58 = scmp.eq.s32.totalorder %s15, 1
    %p59 = por %p57, %p58
    %p61 = scmp.ne.s32.totalorder %s46, %s60
    %p62 = scmp.eq.s32.totalorder %s15, 0
    %p63 = por %p61, %p62
    %s65 = sadd.s32 %s64, 1
    %p68 = scmp.eq.s32.totalorder %s9, 1
    %p69 = scmp.ne.s32.totalorder %s64, %s66
    %p70 = scmp.eq.s32.totalorder %s9, 0
    %p71 = por %p69, %p70
    %p72 = scmp.ne.s32.totalorder %s64, %s66
    %p73 = scmp.eq.s32.totalorder %s14, 1
    %p74 = por %p72, %p73
    %p75 = scmp.ne.s32.totalorder %s66, %s67
    %p76 = scmp.eq.s32.totalorder %s14, 0
    %p77 = por %p75, %p76
    %p78 = scmp.ne.s32.totalorder %s66, %s67
    %p79 = scmp.eq.s32.totalorder %s15, 1
    %p80 = por %p78, %p79
    %p82 = scmp.ne.s32.totalorder %s67, %s81
    %p83 = scmp.eq.s32.totalorder %s15, 0
    %p84 = por %p82, %p83
    %s85 = ssub.s32 %s9, %s16
    %p86 = scmp.eq.s32.totalorder %s85, 0
    %s88 = sadd.s32 %s87, 1
    %s89 = scalar_select %p86, %s87, %s88
    %p92 = pneg %p86
    %p93 = scmp.eq.s32.totalorder %s9, 1
    %p94 = por %p92, %p93
    %p95 = scmp.ne.s32.totalorder %s87, %s90
    %p96 = scmp.eq.s32.totalorder %s9, 0
    %p97 = por %p95, %p96
    %p98 = scmp.ne.s32.totalorder %s87, %s90
    %p99 = scmp.eq.s32.totalorder %s14, 1
    %p100 = por %p98, %p99
    %p101 = scmp.ne.s32.totalorder %s90, %s91
    %p102 = scmp.eq.s32.totalorder %s14, 0
    %p103 = por %p101, %p102
    %p104 = scmp.ne.s32.totalorder %s90, %s91
    %p105 = scmp.eq.s32.totalorder %s15, 1
    %p106 = por %p104, %p105
    %p108 = scmp.ne.s32.totalorder %s91, %s107
    %p109 = scmp.eq.s32.totalorder %s15, 0
    %p110 = por %p108, %p109
    %p111 = scmp.le.s32.totalorder 1, %s9
    %p112 = scmp.lt.s32.totalorder %s9, 3
    %p113 = pnand %p111, %p112
    %p114 = pneg %p113
    // Predicated region
    $region9: #{double_conv.5} parent=5 // pred_check
      _
    $region10: #{double_conv.5} parent=5 // pred_check_branch
      %116 = sbr.rel (%p113) target = $region12
    $region11: #{double_conv.5} parent=5 // pred_region
      %s117 = ssub.s32 %s9, 1
      // Predicated region
      $region13: #{double_conv.5} parent=11 // pred_check
        %p118 = pneg %p56
      $region14: #{double_conv.5} parent=11 // pred_check_branch
        %120 = sbr.rel (%p118) target = $region16
      $region15: #{double_conv.5} parent=11 // pred_region
        _
      $region16: #{double_conv.5} parent=11 // pred_fallthru
        _
      // Predicated region
      $region17: #{double_conv.5} parent=11 // pred_check
        %p121 = pneg %p77
      $region18: #{double_conv.5} parent=11 // pred_check_branch
        %123 = sbr.rel (%p121) target = $region20
      $region19: #{double_conv.5} parent=11 // pred_region
        _
      $region20: #{double_conv.5} parent=11 // pred_fallthru
        _
    $region12: #{double_conv.5} parent=5 // pred_fallthru
      _
    %p124 = scmp.lt.s32.totalorder %s9, 2
    // Predicated region
    $region21: #{double_conv.5} parent=5 // pred_check
      %p125 = pneg %p124
    $region22: #{double_conv.5} parent=5 // pred_check_branch
      %127 = sbr.rel (%p125) target = $region24
    $region23: #{double_conv.5} parent=5 // pred_region
      // Predicated region
      $region25: #{double_conv.5} parent=23 // pred_check
        %p128 = pneg %p29
      $region26: #{double_conv.5} parent=23 // pred_check_branch
        %130 = sbr.rel (%p128) target = $region28
      $region27: #{double_conv.5} parent=23 // pred_region
        %p131 = scmp.lt.s32.totalorder %s9, 1
        %s132 = scalar_select %p131, %s9, 1
        %s133 = smul.addr %s132, 2
        %s134 = smul.addr %s133, 8
        %s135 = scalar_lea.vmem %s0, %s134
      $region28: #{double_conv.5} parent=23 // pred_fallthru
        _
    $region24: #{double_conv.5} parent=5 // pred_fallthru
      _
    %p136 = scmp.le.s32.totalorder 1, %s9
    %p137 = scmp.lt.s32.totalorder %s9, 3
    %p138 = pnand %p136, %p137
    %p139 = pneg %p138
    // Predicated region
    $region29: #{double_conv.5} parent=5 // pred_check
      _
    $region30: #{double_conv.5} parent=5 // pred_check_branch
      %141 = sbr.rel (%p138) target = $region32
    $region31: #{double_conv.5} parent=5 // pred_region
      %s142 = ssub.s32 %s9, 1
      %p143 = scmp.lt.s32.totalorder %s14, 1
      %s144 = scalar_select %p143, %s14, 1
      %s145 = smul.addr %s144, 2
      %s146 = smul.addr %s145, 8
      %s147 = scalar_lea.vmem %s0, %s146
      %p148 = pneg %p35
      %p149 = pneg %p32
      %p150 = pneg %p56
      %p151 = pneg %p53
      %p152 = pneg %p77
      %p153 = pneg %p74
      %p154 = pneg %p103
      %p155 = pneg %p100
      %p156 = scmp.lt.s32.totalorder %s14, 1
      %s157 = scalar_select %p156, %s14, 1
      %s158 = smul.addr %s157, 2
      %s159 = smul.addr %s158, 8
      %s160 = scalar_lea.vmem %s3, %s159
      %p161 = scmp.lt.s32.totalorder %s14, 1
      %s162 = scalar_select %p161, %s14, 1
      %s163 = smul.addr %s162, 2
      %s164 = smul.addr %s163, 8
      %s165 = scalar_lea.vmem %s0, %s164
      %p166 = scmp.lt.s32.totalorder %s14, 1
      %s167 = scalar_select %p166, %s14, 1
      %s168 = smul.addr %s167, 2
      %s169 = smul.addr %s168, 8
      %s170 = scalar_lea.vmem %s3, %s169
      %v171 = vld [vmem:[%s165] sm:$0xff]
      %v172 = vld [vmem:[%s165 + $0x8] sm:$0xff]
      %v173 = vld [vmem:[%s1] sm:$0xff]
      %175 = vset.pattern.permute.xlu0 0
      %176 = vperm.xlu0 %175, %v173
      %v177 = vpop.permute.xlu0 %176
      %v179 = vmul.f32 %v171, %v177
      %v180 = vmul.f32 %v172, %v177
      %v181 = vld [vmem:[%s2] sm:$0xff]
      %183 = vset.pattern.permute.xlu0 0
      %184 = vperm.xlu0 %183, %v181
      %v185 = vpop.permute.xlu0 %184
      %v187 = vadd.f32 %v179, %v185
      %v188 = vadd.f32 %v180, %v185
      %vm189 = vcmp.ge.f32.partialorder %v187, 0.0
      %vm190 = vcmp.ge.f32.partialorder %v188, 0.0
      %v191 = vmul.f32 %v187, 0.01
      %v192 = vmul.f32 %v188, 0.01
      %v193 = vsel %vm189, %v187, %v191
      %v194 = vsel %vm190, %v188, %v192
      %195 = vst [vmem:[%s170] sm:$0xff] %v193
      %196 = vst [vmem:[%s170 + $0x8] sm:$0xff] %v194
      %p197 = scmp.lt.s32.totalorder %s14, 1
      %s198 = scalar_select %p197, %s14, 1
      %s199 = smul.addr %s198, 2
      %s200 = smul.addr %s199, 8
      %s201 = scalar_lea.vmem %s3, %s200
      // Predicated region
      $region33: #{double_conv.5} parent=31 // pred_check
        %p202 = pneg %p100
      $region34: #{double_conv.5} parent=31 // pred_check_branch
        %204 = sbr.rel (%p202) target = $region36
      $region35: #{double_conv.5} parent=31 // pred_region
        _
      $region36: #{double_conv.5} parent=31 // pred_fallthru
        _
    $region32: #{double_conv.5} parent=5 // pred_fallthru
      _
    %p205 = scmp.le.s32.totalorder 2, %s9
    // Predicated region
    $region37: #{double_conv.5} parent=5 // pred_check
      %p206 = pneg %p205
    $region38: #{double_conv.5} parent=5 // pred_check_branch
      %208 = sbr.rel (%p206) target = $region40
    $region39: #{double_conv.5} parent=5 // pred_region
      %s209 = ssub.s32 %s9, 2
      // Predicated region
      $region41: #{double_conv.5} parent=39 // pred_check
        %p210 = pneg %p106
      $region42: #{double_conv.5} parent=39 // pred_check_branch
        %212 = sbr.rel (%p210) target = $region44
      $region43: #{double_conv.5} parent=39 // pred_region
        %p213 = scmp.lt.s32.totalorder %s15, 1
        %s214 = scalar_select %p213, %s15, 1
        %s215 = smul.addr %s214, 2
        %s216 = smul.addr %s215, 8
        %s217 = scalar_lea.vmem %s3, %s216
      $region44: #{double_conv.5} parent=39 // pred_fallthru
        _
    $region40: #{double_conv.5} parent=5 // pred_fallthru
      _
  $region6: #{double_conv.5} parent=0 // loop_footer
    %s13 = sadd.s32 1, %s9
  $region7: #{double_conv.5} parent=0 // loop_footer_branch
    %8 = sbr.rel target = $region3
  $region8: #{double_conv.5} parent=0 // loop_exit
    _

// kernel: double_conv.4
$region0: #{double_conv.4}
  #allocation0 [shape = 'u32[]', space=smem, size = 0x4, offset = 0x4, fixed_abs, tag = 'smem constant byte address 0x4 - core index']
  #allocation1 [shape = 'u32[72,128]{1,0:T(1,128)}', space=vmem, size = 0x9000, scoped, tag = 'internal scratch']
  #allocation2 [shape = 'f32[8,512]{1,0:T(8,128)}', space=vmem, size = 0x4000, scoped, tag = 'scratch operand']
  %s0 = inlined_call_operand.vmem [shape: f32[2,8,256], index: 0, kind: input, shape index: {}]
  %s1 = inlined_call_operand.vmem [shape: f32[3,3,8,8], index: 1, kind: input, shape index: {}]
  %s2 = inlined_call_operand.vmem [shape: f32[8,1], index: 2, kind: input, shape index: {}]
  %s3 = inlined_call_operand.vmem [shape: f32[8,1], index: 3, kind: input, shape index: {}]
  %s4 = inlined_call_operand.vmem [shape: f32[2,8,256], index: 4, kind: output, shape index: {0}]
  %s5 = inlined_call_operand.vmem [shape: f32[2,8,1], index: 5, kind: output, shape index: {1}]
  %s6 = inlined_call_operand.vmem [shape: f32[2,8,1], index: 6, kind: output, shape index: {2}]
  %7 = xla_tuple %s4, %s5, %s6
  %s8 = sld [smem:[#allocation0]]
  $region65: #{double_conv.4} parent=0
    _
  %s10 = ssub.s32 1, %s8
  %s11 = scalar_select 0, %s10, %s8
  loop: start=0, step=1, limit=4
  $region2: #{double_conv.4} parent=0 // loop_pre_header
    _
  $region3: #{double_conv.4} parent=0 // loop_header
    %s13 = sphi 0, %s17
    %p14 = scmp.ge.s32.totalorder %s13, 4
    %s23 = sphi 0, %s25
    %s26 = sphi 0, %s23
    %s27 = sphi 0, %s26
    %s43 = sphi 0, %s27
    %s47 = sphi 0, %s47
    %s49 = sphi 0, %s47
    %s50 = sphi 0, %s49
    %s64 = sphi 0, %s50
    %s68 = sphi 0, %s68
    %s70 = sphi 0, %s68
    %s71 = sphi 0, %s70
    %s85 = sphi 0, %s71
    %s89 = sphi 0, %s89
    %s91 = sphi 0, %s89
    %s92 = sphi 0, %s91
    %s106 = sphi 0, %s92
    %s112 = sphi 0, %s114
    %s115 = sphi 0, %s112
    %s116 = sphi 0, %s115
    %s132 = sphi 0, %s116
    %s138 = sphi 0, %s140
    %s141 = sphi 0, %s138
    %s142 = sphi 0, %s141
    %s158 = sphi 0, %s142
    %s164 = sphi 0, %s166
    %s167 = sphi 0, %s164
    %s168 = sphi 0, %s167
    %s184 = sphi 0, %s168
  $region4: #{double_conv.4} parent=0 // loop_header_branch
    %16 = sbr.rel (%p14) target = $region8
  $region5: #{double_conv.4} parent=0 // loop_body
    %s18 = ssub.s32 %s13, 1
    %s19 = ssub.s32 %s13, 2
    %s20 = sadd.s32 %s13, 1
    %s21 = ssub.s32 %s13, %s20
    %p22 = scmp.eq.s32.totalorder %s21, 0
    %s24 = sadd.s32 %s23, 1
    %s25 = scalar_select %p22, %s23, %s24
    %p28 = pneg %p22
    %p29 = scmp.eq.s32.totalorder %s13, 1
    %p30 = por %p28, %p29
    %p31 = scmp.ne.s32.totalorder %s23, %s26
    %p32 = scmp.eq.s32.totalorder %s13, 0
    %p33 = por %p31, %p32
    %p34 = scmp.ne.s32.totalorder %s23, %s26
    %p35 = scmp.eq.s32.totalorder %s18, 1
    %p36 = por %p34, %p35
    %p37 = scmp.ne.s32.totalorder %s26, %s27
    %p38 = scmp.eq.s32.totalorder %s18, 0
    %p39 = por %p37, %p38
    %p40 = scmp.ne.s32.totalorder %s26, %s27
    %p41 = scmp.eq.s32.totalorder %s19, 1
    %p42 = por %p40, %p41
    %p44 = scmp.ne.s32.totalorder %s27, %s43
    %p45 = scmp.eq.s32.totalorder %s19, 0
    %p46 = por %p44, %p45
    %s48 = sadd.s32 %s47, 1
    %p51 = scmp.eq.s32.totalorder %s13, 1
    %p52 = scmp.ne.s32.totalorder %s47, %s49
    %p53 = scmp.eq.s32.totalorder %s13, 0
    %p54 = por %p52, %p53
    %p55 = scmp.ne.s32.totalorder %s47, %s49
    %p56 = scmp.eq.s32.totalorder %s18, 1
    %p57 = por %p55, %p56
    %p58 = scmp.ne.s32.totalorder %s49, %s50
    %p59 = scmp.eq.s32.totalorder %s18, 0
    %p60 = por %p58, %p59
    %p61 = scmp.ne.s32.totalorder %s49, %s50
    %p62 = scmp.eq.s32.totalorder %s19, 1
    %p63 = por %p61, %p62
    %p65 = scmp.ne.s32.totalorder %s50, %s64
    %p66 = scmp.eq.s32.totalorder %s19, 0
    %p67 = por %p65, %p66
    %s69 = sadd.s32 %s68, 1
    %p72 = scmp.eq.s32.totalorder %s13, 1
    %p73 = scmp.ne.s32.totalorder %s68, %s70
    %p74 = scmp.eq.s32.totalorder %s13, 0
    %p75 = por %p73, %p74
    %p76 = scmp.ne.s32.totalorder %s68, %s70
    %p77 = scmp.eq.s32.totalorder %s18, 1
    %p78 = por %p76, %p77
    %p79 = scmp.ne.s32.totalorder %s70, %s71
    %p80 = scmp.eq.s32.totalorder %s18, 0
    %p81 = por %p79, %p80
    %p82 = scmp.ne.s32.totalorder %s70, %s71
    %p83 = scmp.eq.s32.totalorder %s19, 1
    %p84 = por %p82, %p83
    %p86 = scmp.ne.s32.totalorder %s71, %s85
    %p87 = scmp.eq.s32.totalorder %s19, 0
    %p88 = por %p86, %p87
    %s90 = sadd.s32 %s89, 1
    %p93 = scmp.eq.s32.totalorder %s13, 1
    %p94 = scmp.ne.s32.totalorder %s89, %s91
    %p95 = scmp.eq.s32.totalorder %s13, 0
    %p96 = por %p94, %p95
    %p97 = scmp.ne.s32.totalorder %s89, %s91
    %p98 = scmp.eq.s32.totalorder %s18, 1
    %p99 = por %p97, %p98
    %p100 = scmp.ne.s32.totalorder %s91, %s92
    %p101 = scmp.eq.s32.totalorder %s18, 0
    %p102 = por %p100, %p101
    %p103 = scmp.ne.s32.totalorder %s91, %s92
    %p104 = scmp.eq.s32.totalorder %s19, 1
    %p105 = por %p103, %p104
    %p107 = scmp.ne.s32.totalorder %s92, %s106
    %p108 = scmp.eq.s32.totalorder %s19, 0
    %p109 = por %p107, %p108
    %s110 = ssub.s32 %s13, %s20
    %p111 = scmp.eq.s32.totalorder %s110, 0
    %s113 = sadd.s32 %s112, 1
    %s114 = scalar_select %p111, %s112, %s113
    %p117 = pneg %p111
    %p118 = scmp.eq.s32.totalorder %s13, 1
    %p119 = por %p117, %p118
    %p120 = scmp.ne.s32.totalorder %s112, %s115
    %p121 = scmp.eq.s32.totalorder %s13, 0
    %p122 = por %p120, %p121
    %p123 = scmp.ne.s32.totalorder %s112, %s115
    %p124 = scmp.eq.s32.totalorder %s18, 1
    %p125 = por %p123, %p124
    %p126 = scmp.ne.s32.totalorder %s115, %s116
    %p127 = scmp.eq.s32.totalorder %s18, 0
    %p128 = por %p126, %p127
    %p129 = scmp.ne.s32.totalorder %s115, %s116
    %p130 = scmp.eq.s32.totalorder %s19, 1
    %p131 = por %p129, %p130
    %p133 = scmp.ne.s32.totalorder %s116, %s132
    %p134 = scmp.eq.s32.totalorder %s19, 0
    %p135 = por %p133, %p134
    %s136 = ssub.s32 %s13, %s20
    %p137 = scmp.eq.s32.totalorder %s136, 0
    %s139 = sadd.s32 %s138, 1
    %s140 = scalar_select %p137, %s138, %s139
    %p143 = pneg %p137
    %p144 = scmp.eq.s32.totalorder %s13, 1
    %p145 = por %p143, %p144
    %p146 = scmp.ne.s32.totalorder %s138, %s141
    %p147 = scmp.eq.s32.totalorder %s13, 0
    %p148 = por %p146, %p147
    %p149 = scmp.ne.s32.totalorder %s138, %s141
    %p150 = scmp.eq.s32.totalorder %s18, 1
    %p151 = por %p149, %p150
    %p152 = scmp.ne.s32.totalorder %s141, %s142
    %p153 = scmp.eq.s32.totalorder %s18, 0
    %p154 = por %p152, %p153
    %p155 = scmp.ne.s32.totalorder %s141, %s142
    %p156 = scmp.eq.s32.totalorder %s19, 1
    %p157 = por %p155, %p156
    %p159 = scmp.ne.s32.totalorder %s142, %s158
    %p160 = scmp.eq.s32.totalorder %s19, 0
    %p161 = por %p159, %p160
    %s162 = ssub.s32 %s13, %s20
    %p163 = scmp.eq.s32.totalorder %s162, 0
    %s165 = sadd.s32 %s164, 1
    %s166 = scalar_select %p163, %s164, %s165
    %p169 = pneg %p163
    %p170 = scmp.eq.s32.totalorder %s13, 1
    %p171 = por %p169, %p170
    %p172 = scmp.ne.s32.totalorder %s164, %s167
    %p173 = scmp.eq.s32.totalorder %s13, 0
    %p174 = por %p172, %p173
    %p175 = scmp.ne.s32.totalorder %s164, %s167
    %p176 = scmp.eq.s32.totalorder %s18, 1
    %p177 = por %p175, %p176
    %p178 = scmp.ne.s32.totalorder %s167, %s168
    %p179 = scmp.eq.s32.totalorder %s18, 0
    %p180 = por %p178, %p179
    %p181 = scmp.ne.s32.totalorder %s167, %s168
    %p182 = scmp.eq.s32.totalorder %s19, 1
    %p183 = por %p181, %p182
    %p185 = scmp.ne.s32.totalorder %s168, %s184
    %p186 = scmp.eq.s32.totalorder %s19, 0
    %p187 = por %p185, %p186
    %p188 = scmp.le.s32.totalorder 1, %s13
    %p189 = scmp.lt.s32.totalorder %s13, 3
    %p190 = pnand %p188, %p189
    %p191 = pneg %p190
    // Predicated region
    $region9: #{double_conv.4} parent=5 // pred_check
      _
    $region10: #{double_conv.4} parent=5 // pred_check_branch
      %193 = sbr.rel (%p190) target = $region12
    $region11: #{double_conv.4} parent=5 // pred_region
      %s194 = ssub.s32 %s13, 1
      // Predicated region
      $region13: #{double_conv.4} parent=11 // pred_check
        %p195 = pneg %p60
      $region14: #{double_conv.4} parent=11 // pred_check_branch
        %197 = sbr.rel (%p195) target = $region16
      $region15: #{double_conv.4} parent=11 // pred_region
        _
      $region16: #{double_conv.4} parent=11 // pred_fallthru
        _
      // Predicated region
      $region17: #{double_conv.4} parent=11 // pred_check
        %p198 = pneg %p81
      $region18: #{double_conv.4} parent=11 // pred_check_branch
        %200 = sbr.rel (%p198) target = $region20
      $region19: #{double_conv.4} parent=11 // pred_region
        _
      $region20: #{double_conv.4} parent=11 // pred_fallthru
        _
      // Predicated region
      $region21: #{double_conv.4} parent=11 // pred_check
        %p201 = pneg %p102
      $region22: #{double_conv.4} parent=11 // pred_check_branch
        %203 = sbr.rel (%p201) target = $region24
      $region23: #{double_conv.4} parent=11 // pred_region
        _
      $region24: #{double_conv.4} parent=11 // pred_fallthru
        _
    $region12: #{double_conv.4} parent=5 // pred_fallthru
      _
    %p204 = scmp.lt.s32.totalorder %s13, 2
    // Predicated region
    $region25: #{double_conv.4} parent=5 // pred_check
      %p205 = pneg %p204
    $region26: #{double_conv.4} parent=5 // pred_check_branch
      %207 = sbr.rel (%p205) target = $region28
    $region27: #{double_conv.4} parent=5 // pred_region
      // Predicated region
      $region29: #{double_conv.4} parent=27 // pred_check
        %p208 = pneg %p33
      $region30: #{double_conv.4} parent=27 // pred_check_branch
        %210 = sbr.rel (%p208) target = $region32
      $region31: #{double_conv.4} parent=27 // pred_region
        %p211 = scmp.lt.s32.totalorder %s13, 1
        %s212 = scalar_select %p211, %s13, 1
        %s213 = smul.addr %s212, 2
        %s214 = smul.addr %s213, 8
        %s215 = scalar_lea.vmem %s0, %s214
      $region32: #{double_conv.4} parent=27 // pred_fallthru
        _
    $region28: #{double_conv.4} parent=5 // pred_fallthru
      _
    %p216 = scmp.le.s32.totalorder 1, %s13
    %p217 = scmp.lt.s32.totalorder %s13, 3
    %p218 = pnand %p216, %p217
    %p219 = pneg %p218
    // Predicated region
    $region33: #{double_conv.4} parent=5 // pred_check
      _
    $region34: #{double_conv.4} parent=5 // pred_check_branch
      %221 = sbr.rel (%p218) target = $region36
    $region35: #{double_conv.4} parent=5 // pred_region
      %s222 = ssub.s32 %s13, 1
      %p223 = scmp.lt.s32.totalorder %s18, 1
      %s224 = scalar_select %p223, %s18, 1
      %s225 = smul.addr %s224, 2
      %s226 = smul.addr %s225, 8
      %s227 = scalar_lea.vmem %s0, %s226
      %p228 = pneg %p39
      %p229 = pneg %p36
      %p230 = pneg %p60
      %p231 = pneg %p57
      %p232 = pneg %p81
      %p233 = pneg %p78
      %p234 = pneg %p102
      %p235 = pneg %p99
      %p236 = pneg %p128
      %p237 = pneg %p125
      %p238 = scmp.lt.s32.totalorder %s18, 1
      %s239 = scalar_select %p238, %s18, 1
      %s240 = smul.addr %s239, 2
      %s241 = smul.addr %s240, 8
      %s242 = scalar_lea.vmem %s4, %s241
      %p243 = pneg %p154
      %p244 = pneg %p151
      %p245 = scmp.lt.s32.totalorder %s18, 1
      %s246 = scalar_select %p245, %s18, 1
      %s247 = smul.addr %s246, 8
      %s248 = scalar_lea.vmem %s5, %s247
      %p249 = pneg %p180
      %p250 = pneg %p177
      %p251 = scmp.lt.s32.totalorder %s18, 1
      %s252 = scalar_select %p251, %s18, 1
      %s253 = smul.addr %s252, 8
      %s254 = scalar_lea.vmem %s6, %s253
      %p255 = scmp.lt.s32.totalorder %s18, 1
      %s256 = scalar_select %p255, %s18, 1
      %s257 = smul.addr %s256, 2
      %s258 = smul.addr %s257, 8
      %s259 = scalar_lea.vmem %s0, %s258
      %p260 = scmp.lt.s32.totalorder %s18, 1
      %s261 = scalar_select %p260, %s18, 1
      %s262 = smul.addr %s261, 2
      %s263 = smul.addr %s262, 8
      %s264 = scalar_lea.vmem %s4, %s263
      %p265 = scmp.lt.s32.totalorder %s18, 1
      %s266 = scalar_select %p265, %s18, 1
      %s267 = smul.addr %s266, 8
      %s268 = scalar_lea.vmem %s5, %s267
      %p269 = scmp.lt.s32.totalorder %s18, 1
      %s270 = scalar_select %p269, %s18, 1
      %s271 = smul.addr %s270, 8
      %s272 = scalar_lea.vmem %s6, %s271
      %v273 = vld [vmem:[%s259] sm:$0xff]
      %v274 = vld [vmem:[%s259 + $0x8] sm:$0xff]
      %v275 = vld [vmem:[%s2] sm:$0xff]
      %277 = vset.pattern.permute.xlu0 0
      %278 = vperm.xlu0 %277, %v275
      %v279 = vpop.permute.xlu0 %278
      %v281 = vmul.f32 %v273, %v279
      %v282 = vmul.f32 %v274, %v279
      %v283 = vld [vmem:[%s3] sm:$0xff]
      %285 = vset.pattern.permute.xlu0 0
      %286 = vperm.xlu0 %285, %v283
      %v287 = vpop.permute.xlu0 %286
      %v289 = vadd.f32 %v281, %v287
      %v290 = vadd.f32 %v282, %v287
      %vm291 = vcmp.ge.f32.partialorder %v289, 0.0
      %vm292 = vcmp.ge.f32.partialorder %v290, 0.0
      %v293 = vmul.f32 %v289, 0.01
      %v294 = vmul.f32 %v290, 0.01
      %v295 = vsel %vm291, %v289, %v293
      %v296 = vsel %vm292, %v290, %v294
      %297 = vst [vmem:[#allocation2] sm:$0xff] 0.0
      %298 = vst [vmem:[#allocation2 + $0x8] sm:$0xff] 0.0
      %299 = vst [vmem:[#allocation2 + $0x10] sm:$0xff] 0.0
      %300 = vst [vmem:[#allocation2 + $0x18] sm:$0xff] 0.0
      %301 = vst [vmem:[#allocation2 + $0x8] sm:$0xff] %v295
      %302 = vst [vmem:[#allocation2 + $0x10] sm:$0xff] %v296
      %v303 = vlaneseq
      %v304 = vand.u32 %v303, 127
      %v305 = vadd.s32 %v304, 128
      %v306 = vand.u32 %v304, 15
      %v307 = vand.u32 %v305, 15
      %v308 = vld [vmem:[#allocation2] sm:$0xff]
      %v309 = vld [vmem:[#allocation2 + $0x8] sm:$0xff]
      %v310 = vld [vmem:[#allocation2 + $0x10] sm:$0xff]
      %vm311 = vcmp.ge.s32.totalorder %v306, 1
      %vm312 = vcmp.ge.s32.totalorder %v307, 1
      %v313 = vsel %vm311, 1, 0
      %v314 = vsel %vm312, 1, 0
      %vm315 = vcmp.eq.s32.totalorder %v313, 1
      %vm316 = vcmp.eq.s32.totalorder %v314, 1
      %320 = vrot.lane.b32.xlu0 %v308, 17
      %v321 = vpop.permute.xlu0 %320
      %322 = vrot.lane.b32.xlu0 %v309, 17
      %v323 = vpop.permute.xlu0 %322
      %324 = vrot.lane.b32.xlu0 %v310, 17
      %v325 = vpop.permute.xlu0 %324
      %vm326 = vcmask 138240
      %v327 = vsel %vm326, %v321, %v323
      %v328 = vsel %vm326, %v323, %v325
      %v331 = vsel %vm315, %v327, 0.0
      %v332 = vsel %vm316, %v328, 0.0
      %v333 = vld [vmem:[%s1] sm:$0xff]
      %s334 = scalar_lea.vmem %s1, 8
      %v335 = vld [vmem:[%s334] sm:$0xff]
      %336 = vrot.lane.b32.xlu0 %v308, 16
      %v337 = vpop.permute.xlu0 %336
      %338 = vrot.lane.b32.xlu0 %v309, 16
      %v339 = vpop.permute.xlu0 %338
      %340 = vrot.lane.b32.xlu0 %v310, 16
      %v341 = vpop.permute.xlu0 %340
      %vm342 = vcmask 130048
      %v343 = vsel %vm342, %v337, %v339
      %v344 = vsel %vm342, %v339, %v341
      %vm347 = vcmask 64512
      %v349 = vsel %vm347, %v335, 0
      %351 = vmatpush.msra.mxu0 0.0
      %352 = vmatpush.msra.mxu0 0.0
      %353 = vmatpush.msra.mxu0 0.0
      %354 = vmatpush.msra.mxu0 0.0
      %355 = vmatpush.msra.mxu0 0.0
      %356 = vmatpush.msra.mxu0 0.0
      %357 = vmatpush.msra.mxu0 0.0
      %358 = vmatpush.msra.mxu0 0.0
      %359 = vmatpush.msra.mxu0 0.0
      %360 = vmatpush.msra.mxu0 0.0
      %361 = vmatpush.msra.mxu0 0.0
      %362 = vmatpush.msra.mxu0 0.0
      %363 = vmatpush.msra.mxu0 0.0
      %364 = vmatpush.msra.mxu0 0.0
      %365 = vmatpush.msra.mxu0 0.0
      %366 = vmatpush.msra.mxu0 %v343
      %367 = vmatmul.f32.gmra.mxu0 %v349
      %v368 = vpop.f32.mrf.mxu0
      %v369 = vadd.f32 0.0, %v368
      %370 = vdwg.mxu0
      %371 = vmatpush.msra.mxu0 0.0
      %372 = vmatpush.msra.mxu0 0.0
      %373 = vmatpush.msra.mxu0 0.0
      %374 = vmatpush.msra.mxu0 0.0
      %375 = vmatpush.msra.mxu0 0.0
      %376 = vmatpush.msra.mxu0 0.0
      %377 = vmatpush.msra.mxu0 0.0
      %378 = vmatpush.msra.mxu0 0.0
      %379 = vmatpush.msra.mxu0 0.0
      %380 = vmatpush.msra.mxu0 0.0
      %381 = vmatpush.msra.mxu0 0.0
      %382 = vmatpush.msra.mxu0 0.0
      %383 = vmatpush.msra.mxu0 0.0
      %384 = vmatpush.msra.mxu0 0.0
      %385 = vmatpush.msra.mxu0 0.0
      %386 = vmatpush.msra.mxu0 %v344
      %387 = vmatmul.f32.gmra.mxu0 %v349
      %v388 = vpop.f32.mrf.mxu0
      %v389 = vadd.f32 0.0, %v388
      %390 = vdwg.mxu0
      %v392 = vsel %vm347, %v333, 0
      %394 = vmatpush.msra.mxu0 0.0
      %395 = vmatpush.msra.mxu0 0.0
      %396 = vmatpush.msra.mxu0 0.0
      %397 = vmatpush.msra.mxu0 0.0
      %398 = vmatpush.msra.mxu0 0.0
      %399 = vmatpush.msra.mxu0 0.0
      %400 = vmatpush.msra.mxu0 0.0
      %401 = vmatpush.msra.mxu0 0.0
      %402 = vmatpush.msra.mxu0 0.0
      %403 = vmatpush.msra.mxu0 0.0
      %404 = vmatpush.msra.mxu0 0.0
      %405 = vmatpush.msra.mxu0 0.0
      %406 = vmatpush.msra.mxu0 0.0
      %407 = vmatpush.msra.mxu0 0.0
      %408 = vmatpush.msra.mxu0 0.0
      %409 = vmatpush.msra.mxu0 %v331
      %410 = vmatmul.f32.gmra.mxu0 %v392
      %v411 = vpop.f32.mrf.mxu0
      %v412 = vadd.f32 %v369, %v411
      %413 = vdwg.mxu0
      %414 = vmatpush.msra.mxu0 0.0
      %415 = vmatpush.msra.mxu0 0.0
      %416 = vmatpush.msra.mxu0 0.0
      %417 = vmatpush.msra.mxu0 0.0
      %418 = vmatpush.msra.mxu0 0.0
      %419 = vmatpush.msra.mxu0 0.0
      %420 = vmatpush.msra.mxu0 0.0
      %421 = vmatpush.msra.mxu0 0.0
      %422 = vmatpush.msra.mxu0 0.0
      %423 = vmatpush.msra.mxu0 0.0
      %424 = vmatpush.msra.mxu0 0.0
      %425 = vmatpush.msra.mxu0 0.0
      %426 = vmatpush.msra.mxu0 0.0
      %427 = vmatpush.msra.mxu0 0.0
      %428 = vmatpush.msra.mxu0 0.0
      %429 = vmatpush.msra.mxu0 %v332
      %430 = vmatmul.f32.gmra.mxu0 %v392
      %v431 = vpop.f32.mrf.mxu0
      %v432 = vadd.f32 %v389, %v431
      %433 = vdwg.mxu0
      %vm434 = vcmp.le.s32.totalorder %v306, 14
      %vm435 = vcmp.le.s32.totalorder %v307, 14
      %v436 = vsel %vm434, 1, 0
      %v437 = vsel %vm435, 1, 0
      %vm438 = vcmp.eq.s32.totalorder %v436, 1
      %vm439 = vcmp.eq.s32.totalorder %v437, 1
      %440 = vrot.lane.b32.xlu0 %v308, 15
      %v441 = vpop.permute.xlu0 %440
      %442 = vrot.lane.b32.xlu0 %v309, 15
      %v443 = vpop.permute.xlu0 %442
      %444 = vrot.lane.b32.xlu0 %v310, 15
      %v445 = vpop.permute.xlu0 %444
      %vm446 = vcmask 121856
      %v447 = vsel %vm446, %v441, %v443
      %v448 = vsel %vm446, %v443, %v445
      %v451 = vsel %vm438, %v447, 0.0
      %v452 = vsel %vm439, %v448, 0.0
      %s453 = scalar_lea.vmem %s1, 16
      %v454 = vld [vmem:[%s453] sm:$0xff]
      %v456 = vsel %vm347, %v454, 0
      %458 = vmatpush.msra.mxu0 0.0
      %459 = vmatpush.msra.mxu0 0.0
      %460 = vmatpush.msra.mxu0 0.0
      %461 = vmatpush.msra.mxu0 0.0
      %462 = vmatpush.msra.mxu0 0.0
      %463 = vmatpush.msra.mxu0 0.0
      %464 = vmatpush.msra.mxu0 0.0
      %465 = vmatpush.msra.mxu0 0.0
      %466 = vmatpush.msra.mxu0 0.0
      %467 = vmatpush.msra.mxu0 0.0
      %468 = vmatpush.msra.mxu0 0.0
      %469 = vmatpush.msra.mxu0 0.0
      %470 = vmatpush.msra.mxu0 0.0
      %471 = vmatpush.msra.mxu0 0.0
      %472 = vmatpush.msra.mxu0 0.0
      %473 = vmatpush.msra.mxu0 %v451
      %474 = vmatmul.f32.gmra.mxu0 %v456
      %v475 = vpop.f32.mrf.mxu0
      %v476 = vadd.f32 0.0, %v475
      %477 = vdwg.mxu0
      %478 = vmatpush.msra.mxu0 0.0
      %479 = vmatpush.msra.mxu0 0.0
      %480 = vmatpush.msra.mxu0 0.0
      %481 = vmatpush.msra.mxu0 0.0
      %482 = vmatpush.msra.mxu0 0.0
      %483 = vmatpush.msra.mxu0 0.0
      %484 = vmatpush.msra.mxu0 0.0
      %485 = vmatpush.msra.mxu0 0.0
      %486 = vmatpush.msra.mxu0 0.0
      %487 = vmatpush.msra.mxu0 0.0
      %488 = vmatpush.msra.mxu0 0.0
      %489 = vmatpush.msra.mxu0 0.0
      %490 = vmatpush.msra.mxu0 0.0
      %491 = vmatpush.msra.mxu0 0.0
      %492 = vmatpush.msra.mxu0 0.0
      %493 = vmatpush.msra.mxu0 %v452
      %494 = vmatmul.f32.gmra.mxu0 %v456
      %v495 = vpop.f32.mrf.mxu0
      %v496 = vadd.f32 0.0, %v495
      %497 = vdwg.mxu0
      %v498 = vadd.f32 %v412, %v476
      %v499 = vadd.f32 %v432, %v496
      %500 = vrot.lane.b32.xlu0 %v308, 1
      %v501 = vpop.permute.xlu0 %500
      %502 = vrot.lane.b32.xlu0 %v309, 1
      %v503 = vpop.permute.xlu0 %502
      %504 = vrot.lane.b32.xlu0 %v310, 1
      %v505 = vpop.permute.xlu0 %504
      %vm506 = vcmask 7168
      %v507 = vsel %vm506, %v501, %v503
      %v508 = vsel %vm506, %v503, %v505
      %v511 = vsel %vm315, %v507, 0.0
      %v512 = vsel %vm316, %v508, 0.0
      %s513 = scalar_lea.vmem %s1, 24
      %v514 = vld [vmem:[%s513] sm:$0xff]
      %v516 = vsel %vm347, %v514, 0
      %518 = vmatpush.msra.mxu0 0.0
      %519 = vmatpush.msra.mxu0 0.0
      %520 = vmatpush.msra.mxu0 0.0
      %521 = vmatpush.msra.mxu0 0.0
      %522 = vmatpush.msra.mxu0 0.0
      %523 = vmatpush.msra.mxu0 0.0
      %524 = vmatpush.msra.mxu0 0.0
      %525 = vmatpush.msra.mxu0 0.0
      %526 = vmatpush.msra.mxu0 0.0
      %527 = vmatpush.msra.mxu0 0.0
      %528 = vmatpush.msra.mxu0 0.0
      %529 = vmatpush.msra.mxu0 0.0
      %530 = vmatpush.msra.mxu0 0.0
      %531 = vmatpush.msra.mxu0 0.0
      %532 = vmatpush.msra.mxu0 0.0
      %533 = vmatpush.msra.mxu0 %v511
      %534 = vmatmul.f32.gmra.mxu0 %v516
      %v535 = vpop.f32.mrf.mxu0
      %v536 = vadd.f32 0.0, %v535
      %537 = vdwg.mxu0
      %538 = vmatpush.msra.mxu0 0.0
      %539 = vmatpush.msra.mxu0 0.0
      %540 = vmatpush.msra.mxu0 0.0
      %541 = vmatpush.msra.mxu0 0.0
      %542 = vmatpush.msra.mxu0 0.0
      %543 = vmatpush.msra.mxu0 0.0
      %544 = vmatpush.msra.mxu0 0.0
      %545 = vmatpush.msra.mxu0 0.0
      %546 = vmatpush.msra.mxu0 0.0
      %547 = vmatpush.msra.mxu0 0.0
      %548 = vmatpush.msra.mxu0 0.0
      %549 = vmatpush.msra.mxu0 0.0
      %550 = vmatpush.msra.mxu0 0.0
      %551 = vmatpush.msra.mxu0 0.0
      %552 = vmatpush.msra.mxu0 0.0
      %553 = vmatpush.msra.mxu0 %v512
      %554 = vmatmul.f32.gmra.mxu0 %v516
      %v555 = vpop.f32.mrf.mxu0
      %v556 = vadd.f32 0.0, %v555
      %557 = vdwg.mxu0
      %v558 = vadd.f32 %v498, %v536
      %v559 = vadd.f32 %v499, %v556
      %s560 = scalar_lea.vmem %s1, 32
      %v561 = vld [vmem:[%s560] sm:$0xff]
      %v563 = vsel %vm347, %v561, 0
      %565 = vmatpush.msra.mxu0 0.0
      %566 = vmatpush.msra.mxu0 0.0
      %567 = vmatpush.msra.mxu0 0.0
      %568 = vmatpush.msra.mxu0 0.0
      %569 = vmatpush.msra.mxu0 0.0
      %570 = vmatpush.msra.mxu0 0.0
      %571 = vmatpush.msra.mxu0 0.0
      %572 = vmatpush.msra.mxu0 0.0
      %573 = vmatpush.msra.mxu0 0.0
      %574 = vmatpush.msra.mxu0 0.0
      %575 = vmatpush.msra.mxu0 0.0
      %576 = vmatpush.msra.mxu0 0.0
      %577 = vmatpush.msra.mxu0 0.0
      %578 = vmatpush.msra.mxu0 0.0
      %579 = vmatpush.msra.mxu0 0.0
      %580 = vmatpush.msra.mxu0 %v309
      %581 = vmatmul.f32.gmra.mxu0 %v563
      %v582 = vpop.f32.mrf.mxu0
      %v583 = vadd.f32 0.0, %v582
      %584 = vdwg.mxu0
      %585 = vmatpush.msra.mxu0 0.0
      %586 = vmatpush.msra.mxu0 0.0
      %587 = vmatpush.msra.mxu0 0.0
      %588 = vmatpush.msra.mxu0 0.0
      %589 = vmatpush.msra.mxu0 0.0
      %590 = vmatpush.msra.mxu0 0.0
      %591 = vmatpush.msra.mxu0 0.0
      %592 = vmatpush.msra.mxu0 0.0
      %593 = vmatpush.msra.mxu0 0.0
      %594 = vmatpush.msra.mxu0 0.0
      %595 = vmatpush.msra.mxu0 0.0
      %596 = vmatpush.msra.mxu0 0.0
      %597 = vmatpush.msra.mxu0 0.0
      %598 = vmatpush.msra.mxu0 0.0
      %599 = vmatpush.msra.mxu0 0.0
      %600 = vmatpush.msra.mxu0 %v310
      %601 = vmatmul.f32.gmra.mxu0 %v563
      %v602 = vpop.f32.mrf.mxu0
      %v603 = vadd.f32 0.0, %v602
      %604 = vdwg.mxu0
      %v605 = vadd.f32 %v558, %v583
      %v606 = vadd.f32 %v559, %v603
      %v607 = vld [vmem:[#allocation2 + $0x8] sm:$0xff]
      %v608 = vld [vmem:[#allocation2 + $0x10] sm:$0xff]
      %v609 = vld [vmem:[#allocation2 + $0x18] sm:$0xff]
      %613 = vrot.lane.b32.xlu0 %v607, 127
      %v614 = vpop.permute.xlu0 %613
      %615 = vrot.lane.b32.xlu0 %v608, 127
      %v616 = vpop.permute.xlu0 %615
      %617 = vrot.lane.b32.xlu0 %v609, 127
      %v618 = vpop.permute.xlu0 %617
      %vm619 = vcmask 1039360
      %v620 = vsel %vm619, %v614, %v616
      %v621 = vsel %vm619, %v616, %v618
      %v624 = vsel %vm438, %v620, 0.0
      %v625 = vsel %vm439, %v621, 0.0
      %s626 = scalar_lea.vmem %s1, 40
      %v627 = vld [vmem:[%s626] sm:$0xff]
      %v629 = vsel %vm347, %v627, 0
      %631 = vmatpush.msra.mxu0 0.0
      %632 = vmatpush.msra.mxu0 0.0
      %633 = vmatpush.msra.mxu0 0.0
      %634 = vmatpush.msra.mxu0 0.0
      %635 = vmatpush.msra.mxu0 0.0
      %636 = vmatpush.msra.mxu0 0.0
      %637 = vmatpush.msra.mxu0 0.0
      %638 = vmatpush.msra.mxu0 0.0
      %639 = vmatpush.msra.mxu0 0.0
      %640 = vmatpush.msra.mxu0 0.0
      %641 = vmatpush.msra.mxu0 0.0
      %642 = vmatpush.msra.mxu0 0.0
      %643 = vmatpush.msra.mxu0 0.0
      %644 = vmatpush.msra.mxu0 0.0
      %645 = vmatpush.msra.mxu0 0.0
      %646 = vmatpush.msra.mxu0 %v624
      %647 = vmatmul.f32.gmra.mxu0 %v629
      %v648 = vpop.f32.mrf.mxu0
      %v649 = vadd.f32 0.0, %v648
      %650 = vdwg.mxu0
      %651 = vmatpush.msra.mxu0 0.0
      %652 = vmatpush.msra.mxu0 0.0
      %653 = vmatpush.msra.mxu0 0.0
      %654 = vmatpush.msra.mxu0 0.0
      %655 = vmatpush.msra.mxu0 0.0
      %656 = vmatpush.msra.mxu0 0.0
      %657 = vmatpush.msra.mxu0 0.0
      %658 = vmatpush.msra.mxu0 0.0
      %659 = vmatpush.msra.mxu0 0.0
      %660 = vmatpush.msra.mxu0 0.0
      %661 = vmatpush.msra.mxu0 0.0
      %662 = vmatpush.msra.mxu0 0.0
      %663 = vmatpush.msra.mxu0 0.0
      %664 = vmatpush.msra.mxu0 0.0
      %665 = vmatpush.msra.mxu0 0.0
      %666 = vmatpush.msra.mxu0 %v625
      %667 = vmatmul.f32.gmra.mxu0 %v629
      %v668 = vpop.f32.mrf.mxu0
      %v669 = vadd.f32 0.0, %v668
      %670 = vdwg.mxu0
      %v671 = vadd.f32 %v605, %v649
      %v672 = vadd.f32 %v606, %v669
      %673 = vrot.lane.b32.xlu0 %v607, 113
      %v674 = vpop.permute.xlu0 %673
      %675 = vrot.lane.b32.xlu0 %v608, 113
      %v676 = vpop.permute.xlu0 %675
      %677 = vrot.lane.b32.xlu0 %v609, 113
      %v678 = vpop.permute.xlu0 %677
      %vm679 = vcmask 924672
      %v680 = vsel %vm679, %v674, %v676
      %v681 = vsel %vm679, %v676, %v678
      %v684 = vsel %vm315, %v680, 0.0
      %v685 = vsel %vm316, %v681, 0.0
      %s686 = scalar_lea.vmem %s1, 48
      %v687 = vld [vmem:[%s686] sm:$0xff]
      %v689 = vsel %vm347, %v687, 0
      %691 = vmatpush.msra.mxu0 0.0
      %692 = vmatpush.msra.mxu0 0.0
      %693 = vmatpush.msra.mxu0 0.0
      %694 = vmatpush.msra.mxu0 0.0
      %695 = vmatpush.msra.mxu0 0.0
      %696 = vmatpush.msra.mxu0 0.0
      %697 = vmatpush.msra.mxu0 0.0
      %698 = vmatpush.msra.mxu0 0.0
      %699 = vmatpush.msra.mxu0 0.0
      %700 = vmatpush.msra.mxu0 0.0
      %701 = vmatpush.msra.mxu0 0.0
      %702 = vmatpush.msra.mxu0 0.0
      %703 = vmatpush.msra.mxu0 0.0
      %704 = vmatpush.msra.mxu0 0.0
      %705 = vmatpush.msra.mxu0 0.0
      %706 = vmatpush.msra.mxu0 %v684
      %707 = vmatmul.f32.gmra.mxu0 %v689
      %v708 = vpop.f32.mrf.mxu0
      %v709 = vadd.f32 0.0, %v708
      %710 = vdwg.mxu0
      %711 = vmatpush.msra.mxu0 0.0
      %712 = vmatpush.msra.mxu0 0.0
      %713 = vmatpush.msra.mxu0 0.0
      %714 = vmatpush.msra.mxu0 0.0
      %715 = vmatpush.msra.mxu0 0.0
      %716 = vmatpush.msra.mxu0 0.0
      %717 = vmatpush.msra.mxu0 0.0
      %718 = vmatpush.msra.mxu0 0.0
      %719 = vmatpush.msra.mxu0 0.0
      %720 = vmatpush.msra.mxu0 0.0
      %721 = vmatpush.msra.mxu0 0.0
      %722 = vmatpush.msra.mxu0 0.0
      %723 = vmatpush.msra.mxu0 0.0
      %724 = vmatpush.msra.mxu0 0.0
      %725 = vmatpush.msra.mxu0 0.0
      %726 = vmatpush.msra.mxu0 %v685
      %727 = vmatmul.f32.gmra.mxu0 %v689
      %v728 = vpop.f32.mrf.mxu0
      %v729 = vadd.f32 0.0, %v728
      %730 = vdwg.mxu0
      %v731 = vadd.f32 %v671, %v709
      %v732 = vadd.f32 %v672, %v729
      %s733 = scalar_lea.vmem %s1, 56
      %v734 = vld [vmem:[%s733] sm:$0xff]
      %735 = vrot.lane.b32.xlu0 %v607, 112
      %v736 = vpop.permute.xlu0 %735
      %737 = vrot.lane.b32.xlu0 %v608, 112
      %v738 = vpop.permute.xlu0 %737
      %739 = vrot.lane.b32.xlu0 %v609, 112
      %v740 = vpop.permute.xlu0 %739
      %vm741 = vcmask 916480
      %v742 = vsel %vm741, %v736, %v738
      %v743 = vsel %vm741, %v738, %v740
      %v747 = vsel %vm347, %v734, 0
      %749 = vmatpush.msra.mxu0 0.0
      %750 = vmatpush.msra.mxu0 0.0
      %751 = vmatpush.msra.mxu0 0.0
      %752 = vmatpush.msra.mxu0 0.0
      %753 = vmatpush.msra.mxu0 0.0
      %754 = vmatpush.msra.mxu0 0.0
      %755 = vmatpush.msra.mxu0 0.0
      %756 = vmatpush.msra.mxu0 0.0
      %757 = vmatpush.msra.mxu0 0.0
      %758 = vmatpush.msra.mxu0 0.0
      %759 = vmatpush.msra.mxu0 0.0
      %760 = vmatpush.msra.mxu0 0.0
      %761 = vmatpush.msra.mxu0 0.0
      %762 = vmatpush.msra.mxu0 0.0
      %763 = vmatpush.msra.mxu0 0.0
      %764 = vmatpush.msra.mxu0 %v742
      %765 = vmatmul.f32.gmra.mxu0 %v747
      %v766 = vpop.f32.mrf.mxu0
      %v767 = vadd.f32 0.0, %v766
      %768 = vdwg.mxu0
      %769 = vmatpush.msra.mxu0 0.0
      %770 = vmatpush.msra.mxu0 0.0
      %771 = vmatpush.msra.mxu0 0.0
      %772 = vmatpush.msra.mxu0 0.0
      %773 = vmatpush.msra.mxu0 0.0
      %774 = vmatpush.msra.mxu0 0.0
      %775 = vmatpush.msra.mxu0 0.0
      %776 = vmatpush.msra.mxu0 0.0
      %777 = vmatpush.msra.mxu0 0.0
      %778 = vmatpush.msra.mxu0 0.0
      %779 = vmatpush.msra.mxu0 0.0
      %780 = vmatpush.msra.mxu0 0.0
      %781 = vmatpush.msra.mxu0 0.0
      %782 = vmatpush.msra.mxu0 0.0
      %783 = vmatpush.msra.mxu0 0.0
      %784 = vmatpush.msra.mxu0 %v743
      %785 = vmatmul.f32.gmra.mxu0 %v747
      %v786 = vpop.f32.mrf.mxu0
      %v787 = vadd.f32 0.0, %v786
      %788 = vdwg.mxu0
      %v789 = vadd.f32 %v731, %v767
      %v790 = vadd.f32 %v732, %v787
      %791 = vrot.lane.b32.xlu0 %v607, 111
      %v792 = vpop.permute.xlu0 %791
      %793 = vrot.lane.b32.xlu0 %v608, 111
      %v794 = vpop.permute.xlu0 %793
      %795 = vrot.lane.b32.xlu0 %v609, 111
      %v796 = vpop.permute.xlu0 %795
      %vm797 = vcmask 908288
      %v798 = vsel %vm797, %v792, %v794
      %v799 = vsel %vm797, %v794, %v796
      %v802 = vsel %vm438, %v798, 0.0
      %v803 = vsel %vm439, %v799, 0.0
      %s804 = scalar_lea.vmem %s1, 64
      %v805 = vld [vmem:[%s804] sm:$0xff]
      %v807 = vsel %vm347, %v805, 0
      %809 = vmatpush.msra.mxu0 0.0
      %810 = vmatpush.msra.mxu0 0.0
      %811 = vmatpush.msra.mxu0 0.0
      %812 = vmatpush.msra.mxu0 0.0
      %813 = vmatpush.msra.mxu0 0.0
      %814 = vmatpush.msra.mxu0 0.0
      %815 = vmatpush.msra.mxu0 0.0
      %816 = vmatpush.msra.mxu0 0.0
      %817 = vmatpush.msra.mxu0 0.0
      %818 = vmatpush.msra.mxu0 0.0
      %819 = vmatpush.msra.mxu0 0.0
      %820 = vmatpush.msra.mxu0 0.0
      %821 = vmatpush.msra.mxu0 0.0
      %822 = vmatpush.msra.mxu0 0.0
      %823 = vmatpush.msra.mxu0 0.0
      %824 = vmatpush.msra.mxu0 %v802
      %825 = vmatmul.f32.gmra.mxu0 %v807
      %v826 = vpop.f32.mrf.mxu0
      %v827 = vadd.f32 0.0, %v826
      %828 = vdwg.mxu0
      %829 = vmatpush.msra.mxu0 0.0
      %830 = vmatpush.msra.mxu0 0.0
      %831 = vmatpush.msra.mxu0 0.0
      %832 = vmatpush.msra.mxu0 0.0
      %833 = vmatpush.msra.mxu0 0.0
      %834 = vmatpush.msra.mxu0 0.0
      %835 = vmatpush.msra.mxu0 0.0
      %836 = vmatpush.msra.mxu0 0.0
      %837 = vmatpush.msra.mxu0 0.0
      %838 = vmatpush.msra.mxu0 0.0
      %839 = vmatpush.msra.mxu0 0.0
      %840 = vmatpush.msra.mxu0 0.0
      %841 = vmatpush.msra.mxu0 0.0
      %842 = vmatpush.msra.mxu0 0.0
      %843 = vmatpush.msra.mxu0 0.0
      %844 = vmatpush.msra.mxu0 %v803
      %845 = vmatmul.f32.gmra.mxu0 %v807
      %v846 = vpop.f32.mrf.mxu0
      %v847 = vadd.f32 0.0, %v846
      %848 = vdwg.mxu0
      %v849 = vadd.f32 %v789, %v827
      %v850 = vadd.f32 %v790, %v847
      %851 = vst [vmem:[%s264] sm:$0xff] %v849
      %852 = vst [vmem:[%s264 + $0x8] sm:$0xff] %v850
      %v853 = vadd.f32 %v849, %v850
      %854 = vadd.xlane.f32.xlu0 %v853
      %v855 = vpop.xlane.xlu0 %854
      %856 = vst.msk [vmem:[%s268] sm:$0xff] %vm506, %v855
      %v857 = vmul.f32 %v849, %v849
      %v858 = vmul.f32 %v850, %v850
      %v859 = vadd.f32 %v857, %v858
      %860 = vadd.xlane.f32.xlu0 %v859
      %v861 = vpop.xlane.xlu0 %860
      %862 = vst.msk [vmem:[%s272] sm:$0xff] %vm506, %v861
      %p863 = scmp.lt.s32.totalorder %s18, 1
      %s864 = scalar_select %p863, %s18, 1
      %s865 = smul.addr %s864, 2
      %s866 = smul.addr %s865, 8
      %s867 = scalar_lea.vmem %s4, %s866
      %p868 = scmp.lt.s32.totalorder %s18, 1
      %s869 = scalar_select %p868, %s18, 1
      %s870 = smul.addr %s869, 8
      %s871 = scalar_lea.vmem %s5, %s870
      %p872 = scmp.lt.s32.totalorder %s18, 1
      %s873 = scalar_select %p872, %s18, 1
      %s874 = smul.addr %s873, 8
      %s875 = scalar_lea.vmem %s6, %s874
      // Predicated region
      $region37: #{double_conv.4} parent=35 // pred_check
        %p876 = pneg %p125
      $region38: #{double_conv.4} parent=35 // pred_check_branch
        %878 = sbr.rel (%p876) target = $region40
      $region39: #{double_conv.4} parent=35 // pred_region
        _
      $region40: #{double_conv.4} parent=35 // pred_fallthru
        _
      // Predicated region
      $region41: #{double_conv.4} parent=35 // pred_check
        %p879 = pneg %p151
      $region42: #{double_conv.4} parent=35 // pred_check_branch
        %881 = sbr.rel (%p879) target = $region44
      $region43: #{double_conv.4} parent=35 // pred_region
        _
      $region44: #{double_conv.4} parent=35 // pred_fallthru
        _
      // Predicated region
      $region45: #{double_conv.4} parent=35 // pred_check
        %p882 = pneg %p177
      $region46: #{double_conv.4} parent=35 // pred_check_branch
        %884 = sbr.rel (%p882) target = $region48
      $region47: #{double_conv.4} parent=35 // pred_region
        _
      $region48: #{double_conv.4} parent=35 // pred_fallthru
        _
    $region36: #{double_conv.4} parent=5 // pred_fallthru
      _
    %p885 = scmp.le.s32.totalorder 2, %s13
    // Predicated region
    $region49: #{double_conv.4} parent=5 // pred_check
      %p886 = pneg %p885
    $region50: #{double_conv.4} parent=5 // pred_check_branch
      %888 = sbr.rel (%p886) target = $region52
    $region51: #{double_conv.4} parent=5 // pred_region
      %s889 = ssub.s32 %s13, 2
      // Predicated region
      $region53: #{double_conv.4} parent=51 // pred_check
        %p890 = pneg %p131
      $region54: #{double_conv.4} parent=51 // pred_check_branch
        %892 = sbr.rel (%p890) target = $region56
      $region55: #{double_conv.4} parent=51 // pred_region
        %p893 = scmp.lt.s32.totalorder %s19, 1
        %s894 = scalar_select %p893, %s19, 1
        %s895 = smul.addr %s894, 2
        %s896 = smul.addr %s895, 8
        %s897 = scalar_lea.vmem %s4, %s896
      $region56: #{double_conv.4} parent=51 // pred_fallthru
        _
      // Predicated region
      $region57: #{double_conv.4} parent=51 // pred_check
        %p898 = pneg %p157
      $region58: #{double_conv.4} parent=51 // pred_check_branch
        %900 = sbr.rel (%p898) target = $region60
      $region59: #{double_conv.4} parent=51 // pred_region
        %p901 = scmp.lt.s32.totalorder %s19, 1
        %s902 = scalar_select %p901, %s19, 1
        %s903 = smul.addr %s902, 8
        %s904 = scalar_lea.vmem %s5, %s903
      $region60: #{double_conv.4} parent=51 // pred_fallthru
        _
      // Predicated region
      $region61: #{double_conv.4} parent=51 // pred_check
        %p905 = pneg %p183
      $region62: #{double_conv.4} parent=51 // pred_check_branch
        %907 = sbr.rel (%p905) target = $region64
      $region63: #{double_conv.4} parent=51 // pred_region
        %p908 = scmp.lt.s32.totalorder %s19, 1
        %s909 = scalar_select %p908, %s19, 1
        %s910 = smul.addr %s909, 8
        %s911 = scalar_lea.vmem %s6, %s910
      $region64: #{double_conv.4} parent=51 // pred_fallthru
        _
    $region52: #{double_conv.4} parent=5 // pred_fallthru
      _
  $region6: #{double_conv.4} parent=0 // loop_footer
    %s17 = sadd.s32 1, %s13
  $region7: #{double_conv.4} parent=0 // loop_footer_branch
    %12 = sbr.rel target = $region3
  $region8: #{double_conv.4} parent=0 // loop_exit
    _

</llo_original>
